<compile_context>
chip_gen: v5e
topology: v5e:2x2
jax: 0.10.0
libtpu: 0.0.40
codegen_flags: <defaults>
</compile_context>

<pallas_src>
import jax
import jax.numpy as jnp
from jax.experimental import pallas as pl
from jax.experimental.pallas import tpu as pltpu


# ----------------------------------------------------------------------------
# Fused kernel: one image per grid step, everything resident in VMEM.
# ----------------------------------------------------------------------------
def _cnn_fused_kernel(
    x_ref,      # (1, 4, 256)   one image: channels in sublanes, h*16+w in lanes
    w1_ref,     # (9, 8, 4)     conv1 tap matrices [tap, cout, cin]
    b1_ref,     # (8, 1)
    m1_ref,     # (9, 256)      conv1 per-tap zero-padding masks
    s1_ref,     # (256, 128)    pool1 even-pixel selection (cols >= 64 are zero)
    w2_ref,     # (9, 8, 8)     conv2 tap matrices
    b2_ref,     # (8, 1)
    m2_ref,     # (9, 128)      conv2 per-tap masks (lanes >= 64 masked off)
    s2_ref,     # (128, 16)     pool2 even-pixel selection
    wf1_ref,    # (8, 16, 32)   fc1 weight as [c, h*4+w, k]  (torch flatten order)
    bf1_ref,    # (1, 32)
    wf2_ref,    # (32, 128)     fc2 weight zero-padded to 128 lanes
    bf2_ref,    # (1, 128)
    out_ref,    # (1, 1, 128)
):
    f32 = jnp.float32
    x = x_ref[0]                                                  # (4, 256)

    # ---------------- conv1 (3x3, pad 1, 4->8) + ReLU -----------------------
    acc1 = jnp.zeros((8, 256), f32)
    for t in range(9):                                            # unrolled taps
        dy, dx = t // 3 - 1, t % 3 - 1
        s = dy * 16 + dx
        shifted = x if s == 0 else pltpu.roll(x, shift=(-s) % 256, axis=1)
        shifted = shifted * m1_ref[t:t + 1, :]                    # zero padding
        acc1 = acc1 + jnp.dot(w1_ref[t], shifted, preferred_element_type=f32)
    h1 = jnp.maximum(acc1 + b1_ref[...], 0.0)                     # (8, 256)

    # ---------------- maxpool 2x2 (16x16 -> 8x8) ----------------------------
    pm = jnp.maximum(h1, pltpu.roll(h1, shift=255, axis=1))       # max(p, p+1)
    pm = jnp.maximum(pm, pltpu.roll(pm, shift=240, axis=1))       # ... and p+16
    p1 = jnp.dot(pm, s1_ref[...], preferred_element_type=f32)     # (8, 128)

    # ---------------- conv2 (3x3, pad 1, 8->8) + ReLU -----------------------
    acc2 = jnp.zeros((8, 128), f32)
    for t in range(9):
        dy, dx = t // 3 - 1, t % 3 - 1
        s = dy * 8 + dx
        shifted = p1 if s == 0 else pltpu.roll(p1, shift=(-s) % 128, axis=1)
        shifted = shifted * m2_ref[t:t + 1, :]
        acc2 = acc2 + jnp.dot(w2_ref[t], shifted, preferred_element_type=f32)
    h2 = jnp.maximum(acc2 + b2_ref[...], 0.0)                     # (8, 128)

    # ---------------- maxpool 2x2 (8x8 -> 4x4) ------------------------------
    qm = jnp.maximum(h2, pltpu.roll(h2, shift=127, axis=1))       # max(p, p+1)
    qm = jnp.maximum(qm, pltpu.roll(qm, shift=120, axis=1))       # ... and p+8
    p2 = jnp.dot(qm, s2_ref[...], preferred_element_type=f32)     # (8, 16) [c, hw]

    # ---------------- fc1 + ReLU --------------------------------------------
    # torch NCHW flatten index is c*16 + h*4 + w == row-major order of p2.
    z = bf1_ref[...]                                              # (1, 32)
    for c in range(8):
        z = z + jnp.dot(p2[c:c + 1, :], wf1_ref[c], preferred_element_type=f32)
    z = jnp.maximum(z, 0.0)

    # ---------------- fc2 (lane-dense, padded to 128) -----------------------
    out_ref[0] = (jnp.dot(z, wf2_ref[...], preferred_element_type=f32)
                  + bf2_ref[...]).astype(out_ref.dtype)


def _pinned(arr):
    """Whole-array block that never changes across grid steps (stays in VMEM)."""
    nd = arr.ndim
    return pl.BlockSpec(arr.shape, lambda n: (0,) * nd)


@jax.jit
def cnn_forward(x_nchw, params):
    N = x_nchw.shape[0]
    # NCHW -> (N, C, H*W): a pure reshape, no transpose needed in this layout.
    x_flat = x_nchw.reshape(N, 4, 256).astype(jnp.float32)

    # Conv tap matrices [tap, cout, cin] from HWIO weights.
    w1k = params["conv1_w"].reshape(9, 4, 8).transpose(0, 2, 1)   # (9, 8, 4)
    w2k = params["conv2_w"].reshape(9, 8, 8).transpose(0, 2, 1)   # (9, 8, 8)
    b1 = params["conv1_b"].reshape(8, 1)
    b2 = params["conv2_b"].reshape(8, 1)

    # Per-tap zero-padding masks for the lane-rolled conv taps.
    def tap_masks(hw, lanes):
        p = jnp.arange(lanes)
        h, w = p // hw, p % hw
        rows = []
        for t in range(9):
            dy, dx = t // 3 - 1, t % 3 - 1
            ok = ((p < hw * hw) & (h + dy >= 0) & (h + dy < hw)
                  & (w + dx >= 0) & (w + dx < hw))
            rows.append(ok)
        return jnp.stack(rows).astype(jnp.float32)

    m1 = tap_masks(16, 256)                                       # (9, 256)
    m2 = tap_masks(8, 128)                                        # (9, 128)

    # Even-pixel selection matrices for the 2x2 max-pools (constants).
    q1 = jnp.arange(128)
    sel1 = jnp.where(q1 < 64, (2 * (q1 // 8)) * 16 + 2 * (q1 % 8), -1)
    s1 = (jnp.arange(256)[:, None] == sel1[None, :]).astype(jnp.float32)   # (256,128)
    q2 = jnp.arange(16)
    sel2 = (2 * (q2 // 4)) * 8 + 2 * (q2 % 4)
    s2 = (jnp.arange(128)[:, None] == sel2[None, :]).astype(jnp.float32)   # (128,16)

    # fc weights: fc1 rows are already in [c, h*4+w] order -> plain reshape.
    wf1 = params["fc1_w"].reshape(8, 16, 32)
    bf1 = params["fc1_b"].reshape(1, 32)
    wf2 = jnp.zeros((32, 128), jnp.float32).at[:, :10].set(params["fc2_w"])
    bf2 = jnp.zeros((1, 128), jnp.float32).at[:, :10].set(params["fc2_b"])

    out = pl.pallas_call(
        _cnn_fused_kernel,
        out_shape=jax.ShapeDtypeStruct((N, 1, 128), jnp.float32),
        grid=(N,),
        in_specs=[
            pl.BlockSpec((1, 4, 256), lambda n: (n, 0, 0)),
            _pinned(w1k), _pinned(b1), _pinned(m1), _pinned(s1),
            _pinned(w2k), _pinned(b2), _pinned(m2), _pinned(s2),
            _pinned(wf1), _pinned(bf1), _pinned(wf2), _pinned(bf2),
        ],
        out_specs=pl.BlockSpec((1, 1, 128), lambda n: (n, 0, 0)),
        compiler_params=pltpu.CompilerParams(dimension_semantics=("parallel",)),
    )(x_flat, w1k, b1, m1, s1, w2k, b2, m2, s2, wf1, bf1, wf2, bf2)
    return out.reshape(N, 128)[:, :10]


# ----------------------------------------------------------------------------
# Params / reference / driver
# ----------------------------------------------------------------------------
def init_params(key):
    ks = jax.random.split(key, 8)
    s = 0.1
    return {
        "conv1_w": s * jax.random.normal(ks[0], (3, 3, 4, 8), jnp.float32),   # HWIO
        "conv1_b": s * jax.random.normal(ks[1], (8,), jnp.float32),
        "conv2_w": s * jax.random.normal(ks[2], (3, 3, 8, 8), jnp.float32),   # HWIO
        "conv2_b": s * jax.random.normal(ks[3], (8,), jnp.float32),
        "fc1_w": s * jax.random.normal(ks[4], (128, 32), jnp.float32),
        "fc1_b": s * jax.random.normal(ks[5], (32,), jnp.float32),
        "fc2_w": s * jax.random.normal(ks[6], (32, 10), jnp.float32),
        "fc2_b": s * jax.random.normal(ks[7], (10,), jnp.float32),
    }


def _reference_forward(x_nchw, params):
    """Pure-JAX reference matching the PyTorch module semantics."""
    x = jnp.transpose(x_nchw, (0, 2, 3, 1))

    def conv_relu(x, w, b):
        y = jax.lax.conv_general_dilated(
            x, w, window_strides=(1, 1), padding="SAME",
            dimension_numbers=("NHWC", "HWIO", "NHWC"))
        return jax.nn.relu(y + b)

    def pool(x):
        return jax.lax.reduce_window(
            x, -jnp.inf, jax.lax.max, (1, 2, 2, 1), (1, 2, 2, 1), "VALID")

    x = pool(conv_relu(x, params["conv1_w"], params["conv1_b"]))
    x = pool(conv_relu(x, params["conv2_w"], params["conv2_b"]))
    feat = jnp.transpose(x, (0, 3, 1, 2)).reshape(x.shape[0], -1)   # NCHW flatten
    h = jax.nn.relu(feat @ params["fc1_w"] + params["fc1_b"])
    return h @ params["fc2_w"] + params["fc2_b"]


if __name__ == "__main__":
    key = jax.random.PRNGKey(0)
    k_x, k_p = jax.random.split(key)
    x = jax.random.normal(k_x, (2, 4, 16, 16), jnp.float32)   # NCHW, batch=2
    params = init_params(k_p)

    out = cnn_forward(x, params)
    out = jax.block_until_ready(out)
    assert out.shape == (2, 10) and out.dtype == jnp.float32

    ref = _reference_forward(x, params)
    assert bool(jnp.allclose(out, ref, atol=1e-2, rtol=1e-2))

    print("KERNEL_OK")
</pallas_src>

<mosaic_0001>
module attributes {stable_mosaic.version = 11 : i64} {
  func.func @_cnn_fused_kernel(%arg0: i32, %arg1: memref<1x4x256xf32, #tpu.memory_space<vmem>>, %arg2: memref<9x8x4xf32, #tpu.memory_space<vmem>>, %arg3: memref<8x1xf32, #tpu.memory_space<vmem>>, %arg4: memref<9x256xf32, #tpu.memory_space<vmem>>, %arg5: memref<256x128xf32, #tpu.memory_space<vmem>>, %arg6: memref<9x8x8xf32, #tpu.memory_space<vmem>>, %arg7: memref<8x1xf32, #tpu.memory_space<vmem>>, %arg8: memref<9x128xf32, #tpu.memory_space<vmem>>, %arg9: memref<128x16xf32, #tpu.memory_space<vmem>>, %arg10: memref<8x16x32xf32, #tpu.memory_space<vmem>>, %arg11: memref<1x32xf32, #tpu.memory_space<vmem>>, %arg12: memref<32x128xf32, #tpu.memory_space<vmem>>, %arg13: memref<1x128xf32, #tpu.memory_space<vmem>>, %arg14: memref<1x1x128xf32, #tpu.memory_space<vmem>>) attributes {dimension_semantics = [#tpu.dimension_semantics<parallel>], iteration_bounds = array<i64: 2>, scalar_prefetch = 0 : i64, scratch_operands = 0 : i64, tpu.core_type = #tpu.core_type<tc>, window_params = [{transform_indices = @transform_0, window_bounds = array<i64: 1, 4, 256>}, {pipeline_mode = #tpu.pipeline_mode<synchronous>, transform_indices = @transform_1, window_bounds = array<i64: 9, 8, 4>}, {pipeline_mode = #tpu.pipeline_mode<synchronous>, transform_indices = @transform_2, window_bounds = array<i64: 8, 1>}, {pipeline_mode = #tpu.pipeline_mode<synchronous>, transform_indices = @transform_3, window_bounds = array<i64: 9, 256>}, {pipeline_mode = #tpu.pipeline_mode<synchronous>, transform_indices = @transform_4, window_bounds = array<i64: 256, 128>}, {pipeline_mode = #tpu.pipeline_mode<synchronous>, transform_indices = @transform_5, window_bounds = array<i64: 9, 8, 8>}, {pipeline_mode = #tpu.pipeline_mode<synchronous>, transform_indices = @transform_6, window_bounds = array<i64: 8, 1>}, {pipeline_mode = #tpu.pipeline_mode<synchronous>, transform_indices = @transform_7, window_bounds = array<i64: 9, 128>}, {pipeline_mode = #tpu.pipeline_mode<synchronous>, transform_indices = @transform_8, window_bounds = array<i64: 128, 16>}, {pipeline_mode = #tpu.pipeline_mode<synchronous>, transform_indices = @transform_9, window_bounds = array<i64: 8, 16, 32>}, {pipeline_mode = #tpu.pipeline_mode<synchronous>, transform_indices = @transform_10, window_bounds = array<i64: 1, 32>}, {pipeline_mode = #tpu.pipeline_mode<synchronous>, transform_indices = @transform_11, window_bounds = array<i64: 32, 128>}, {pipeline_mode = #tpu.pipeline_mode<synchronous>, transform_indices = @transform_12, window_bounds = array<i64: 1, 128>}, {transform_indices = @transform_13, window_bounds = array<i64: 1, 1, 128>}]} {
    %c0 = arith.constant 0 : index
    %c0_0 = arith.constant 0 : index
    %c0_1 = arith.constant 0 : index
    %0 = vector.load %arg1[%c0, %c0_0, %c0_1] : memref<1x4x256xf32, #tpu.memory_space<vmem>>, vector<1x4x256xf32>
    %1 = vector.shape_cast %0 : vector<1x4x256xf32> to vector<4x256xf32>
    %cst = arith.constant 0.000000e+00 : f32
    %2 = vector.broadcast %cst : f32 to vector<8x256xf32>
    %c17_i32 = arith.constant 17 : i32
    %3 = tpu.dynamic_rotate %1 by %c17_i32 dim 1 : vector<4x256xf32>, i32 -> vector<4x256xf32>
    %c0_2 = arith.constant 0 : index
    %c0_3 = arith.constant 0 : index
    %4 = vector.load %arg4[%c0_2, %c0_3] : memref<9x256xf32, #tpu.memory_space<vmem>>, vector<1x256xf32>
    %5 = vector.broadcast %4 : vector<1x256xf32> to vector<4x256xf32>
    %6 = arith.mulf %3, %5 : vector<4x256xf32>
    %c0_4 = arith.constant 0 : index
    %c0_5 = arith.constant 0 : index
    %c0_6 = arith.constant 0 : index
    %7 = vector.load %arg2[%c0_4, %c0_5, %c0_6] : memref<9x8x4xf32, #tpu.memory_space<vmem>>, vector<1x8x4xf32>
    %8 = vector.shape_cast %7 : vector<1x8x4xf32> to vector<8x4xf32>
    %cst_7 = arith.constant dense<0.000000e+00> : vector<8x256xf32>
    %9 = tpu.matmul %8, %6, %cst_7 {dimension_numbers = #tpu.dot_dimension_numbers<[1], [0], [0], [1], [0, 0, 1, 1], [], []>} : vector<8x4xf32>, vector<4x256xf32>, vector<8x256xf32> -> vector<8x256xf32>
    %10 = arith.addf %2, %9 : vector<8x256xf32>
    %c16_i32 = arith.constant 16 : i32
    %11 = tpu.dynamic_rotate %1 by %c16_i32 dim 1 : vector<4x256xf32>, i32 -> vector<4x256xf32>
    %c1 = arith.constant 1 : index
    %c0_8 = arith.constant 0 : index
    %12 = vector.load %arg4[%c1, %c0_8] : memref<9x256xf32, #tpu.memory_space<vmem>>, vector<1x256xf32>
    %13 = vector.broadcast %12 : vector<1x256xf32> to vector<4x256xf32>
    %14 = arith.mulf %11, %13 : vector<4x256xf32>
    %c1_9 = arith.constant 1 : index
    %c0_10 = arith.constant 0 : index
    %c0_11 = arith.constant 0 : index
    %15 = vector.load %arg2[%c1_9, %c0_10, %c0_11] : memref<9x8x4xf32, #tpu.memory_space<vmem>>, vector<1x8x4xf32>
    %16 = vector.shape_cast %15 : vector<1x8x4xf32> to vector<8x4xf32>
    %cst_12 = arith.constant dense<0.000000e+00> : vector<8x256xf32>
    %17 = tpu.matmul %16, %14, %cst_12 {dimension_numbers = #tpu.dot_dimension_numbers<[1], [0], [0], [1], [0, 0, 1, 1], [], []>} : vector<8x4xf32>, vector<4x256xf32>, vector<8x256xf32> -> vector<8x256xf32>
    %18 = arith.addf %10, %17 : vector<8x256xf32>
    %c15_i32 = arith.constant 15 : i32
    %19 = tpu.dynamic_rotate %1 by %c15_i32 dim 1 : vector<4x256xf32>, i32 -> vector<4x256xf32>
    %c2 = arith.constant 2 : index
    %c0_13 = arith.constant 0 : index
    %20 = vector.load %arg4[%c2, %c0_13] : memref<9x256xf32, #tpu.memory_space<vmem>>, vector<1x256xf32>
    %21 = vector.broadcast %20 : vector<1x256xf32> to vector<4x256xf32>
    %22 = arith.mulf %19, %21 : vector<4x256xf32>
    %c2_14 = arith.constant 2 : index
    %c0_15 = arith.constant 0 : index
    %c0_16 = arith.constant 0 : index
    %23 = vector.load %arg2[%c2_14, %c0_15, %c0_16] : memref<9x8x4xf32, #tpu.memory_space<vmem>>, vector<1x8x4xf32>
    %24 = vector.shape_cast %23 : vector<1x8x4xf32> to vector<8x4xf32>
    %cst_17 = arith.constant dense<0.000000e+00> : vector<8x256xf32>
    %25 = tpu.matmul %24, %22, %cst_17 {dimension_numbers = #tpu.dot_dimension_numbers<[1], [0], [0], [1], [0, 0, 1, 1], [], []>} : vector<8x4xf32>, vector<4x256xf32>, vector<8x256xf32> -> vector<8x256xf32>
    %26 = arith.addf %18, %25 : vector<8x256xf32>
    %c1_i32 = arith.constant 1 : i32
    %27 = tpu.dynamic_rotate %1 by %c1_i32 dim 1 : vector<4x256xf32>, i32 -> vector<4x256xf32>
    %c3 = arith.constant 3 : index
    %c0_18 = arith.constant 0 : index
    %28 = vector.load %arg4[%c3, %c0_18] : memref<9x256xf32, #tpu.memory_space<vmem>>, vector<1x256xf32>
    %29 = vector.broadcast %28 : vector<1x256xf32> to vector<4x256xf32>
    %30 = arith.mulf %27, %29 : vector<4x256xf32>
    %c3_19 = arith.constant 3 : index
    %c0_20 = arith.constant 0 : index
    %c0_21 = arith.constant 0 : index
    %31 = vector.load %arg2[%c3_19, %c0_20, %c0_21] : memref<9x8x4xf32, #tpu.memory_space<vmem>>, vector<1x8x4xf32>
    %32 = vector.shape_cast %31 : vector<1x8x4xf32> to vector<8x4xf32>
    %cst_22 = arith.constant dense<0.000000e+00> : vector<8x256xf32>
    %33 = tpu.matmul %32, %30, %cst_22 {dimension_numbers = #tpu.dot_dimension_numbers<[1], [0], [0], [1], [0, 0, 1, 1], [], []>} : vector<8x4xf32>, vector<4x256xf32>, vector<8x256xf32> -> vector<8x256xf32>
    %34 = arith.addf %26, %33 : vector<8x256xf32>
    %c4 = arith.constant 4 : index
    %c0_23 = arith.constant 0 : index
    %35 = vector.load %arg4[%c4, %c0_23] : memref<9x256xf32, #tpu.memory_space<vmem>>, vector<1x256xf32>
    %36 = vector.broadcast %35 : vector<1x256xf32> to vector<4x256xf32>
    %37 = arith.mulf %1, %36 : vector<4x256xf32>
    %c4_24 = arith.constant 4 : index
    %c0_25 = arith.constant 0 : index
    %c0_26 = arith.constant 0 : index
    %38 = vector.load %arg2[%c4_24, %c0_25, %c0_26] : memref<9x8x4xf32, #tpu.memory_space<vmem>>, vector<1x8x4xf32>
    %39 = vector.shape_cast %38 : vector<1x8x4xf32> to vector<8x4xf32>
    %cst_27 = arith.constant dense<0.000000e+00> : vector<8x256xf32>
    %40 = tpu.matmul %39, %37, %cst_27 {dimension_numbers = #tpu.dot_dimension_numbers<[1], [0], [0], [1], [0, 0, 1, 1], [], []>} : vector<8x4xf32>, vector<4x256xf32>, vector<8x256xf32> -> vector<8x256xf32>
    %41 = arith.addf %34, %40 : vector<8x256xf32>
    %c255_i32 = arith.constant 255 : i32
    %42 = tpu.dynamic_rotate %1 by %c255_i32 dim 1 : vector<4x256xf32>, i32 -> vector<4x256xf32>
    %c5 = arith.constant 5 : index
    %c0_28 = arith.constant 0 : index
    %43 = vector.load %arg4[%c5, %c0_28] : memref<9x256xf32, #tpu.memory_space<vmem>>, vector<1x256xf32>
    %44 = vector.broadcast %43 : vector<1x256xf32> to vector<4x256xf32>
    %45 = arith.mulf %42, %44 : vector<4x256xf32>
    %c5_29 = arith.constant 5 : index
    %c0_30 = arith.constant 0 : index
    %c0_31 = arith.constant 0 : index
    %46 = vector.load %arg2[%c5_29, %c0_30, %c0_31] : memref<9x8x4xf32, #tpu.memory_space<vmem>>, vector<1x8x4xf32>
    %47 = vector.shape_cast %46 : vector<1x8x4xf32> to vector<8x4xf32>
    %cst_32 = arith.constant dense<0.000000e+00> : vector<8x256xf32>
    %48 = tpu.matmul %47, %45, %cst_32 {dimension_numbers = #tpu.dot_dimension_numbers<[1], [0], [0], [1], [0, 0, 1, 1], [], []>} : vector<8x4xf32>, vector<4x256xf32>, vector<8x256xf32> -> vector<8x256xf32>
    %49 = arith.addf %41, %48 : vector<8x256xf32>
    %c241_i32 = arith.constant 241 : i32
    %50 = tpu.dynamic_rotate %1 by %c241_i32 dim 1 : vector<4x256xf32>, i32 -> vector<4x256xf32>
    %c6 = arith.constant 6 : index
    %c0_33 = arith.constant 0 : index
    %51 = vector.load %arg4[%c6, %c0_33] : memref<9x256xf32, #tpu.memory_space<vmem>>, vector<1x256xf32>
    %52 = vector.broadcast %51 : vector<1x256xf32> to vector<4x256xf32>
    %53 = arith.mulf %50, %52 : vector<4x256xf32>
    %c6_34 = arith.constant 6 : index
    %c0_35 = arith.constant 0 : index
    %c0_36 = arith.constant 0 : index
    %54 = vector.load %arg2[%c6_34, %c0_35, %c0_36] : memref<9x8x4xf32, #tpu.memory_space<vmem>>, vector<1x8x4xf32>
    %55 = vector.shape_cast %54 : vector<1x8x4xf32> to vector<8x4xf32>
    %cst_37 = arith.constant dense<0.000000e+00> : vector<8x256xf32>
    %56 = tpu.matmul %55, %53, %cst_37 {dimension_numbers = #tpu.dot_dimension_numbers<[1], [0], [0], [1], [0, 0, 1, 1], [], []>} : vector<8x4xf32>, vector<4x256xf32>, vector<8x256xf32> -> vector<8x256xf32>
    %57 = arith.addf %49, %56 : vector<8x256xf32>
    %c240_i32 = arith.constant 240 : i32
    %58 = tpu.dynamic_rotate %1 by %c240_i32 dim 1 : vector<4x256xf32>, i32 -> vector<4x256xf32>
    %c7 = arith.constant 7 : index
    %c0_38 = arith.constant 0 : index
    %59 = vector.load %arg4[%c7, %c0_38] : memref<9x256xf32, #tpu.memory_space<vmem>>, vector<1x256xf32>
    %60 = vector.broadcast %59 : vector<1x256xf32> to vector<4x256xf32>
    %61 = arith.mulf %58, %60 : vector<4x256xf32>
    %c7_39 = arith.constant 7 : index
    %c0_40 = arith.constant 0 : index
    %c0_41 = arith.constant 0 : index
    %62 = vector.load %arg2[%c7_39, %c0_40, %c0_41] : memref<9x8x4xf32, #tpu.memory_space<vmem>>, vector<1x8x4xf32>
    %63 = vector.shape_cast %62 : vector<1x8x4xf32> to vector<8x4xf32>
    %cst_42 = arith.constant dense<0.000000e+00> : vector<8x256xf32>
    %64 = tpu.matmul %63, %61, %cst_42 {dimension_numbers = #tpu.dot_dimension_numbers<[1], [0], [0], [1], [0, 0, 1, 1], [], []>} : vector<8x4xf32>, vector<4x256xf32>, vector<8x256xf32> -> vector<8x256xf32>
    %65 = arith.addf %57, %64 : vector<8x256xf32>
    %c239_i32 = arith.constant 239 : i32
    %66 = tpu.dynamic_rotate %1 by %c239_i32 dim 1 : vector<4x256xf32>, i32 -> vector<4x256xf32>
    %c8 = arith.constant 8 : index
    %c0_43 = arith.constant 0 : index
    %67 = vector.load %arg4[%c8, %c0_43] : memref<9x256xf32, #tpu.memory_space<vmem>>, vector<1x256xf32>
    %68 = vector.broadcast %67 : vector<1x256xf32> to vector<4x256xf32>
    %69 = arith.mulf %66, %68 : vector<4x256xf32>
    %c8_44 = arith.constant 8 : index
    %c0_45 = arith.constant 0 : index
    %c0_46 = arith.constant 0 : index
    %70 = vector.load %arg2[%c8_44, %c0_45, %c0_46] : memref<9x8x4xf32, #tpu.memory_space<vmem>>, vector<1x8x4xf32>
    %71 = vector.shape_cast %70 : vector<1x8x4xf32> to vector<8x4xf32>
    %cst_47 = arith.constant dense<0.000000e+00> : vector<8x256xf32>
    %72 = tpu.matmul %71, %69, %cst_47 {dimension_numbers = #tpu.dot_dimension_numbers<[1], [0], [0], [1], [0, 0, 1, 1], [], []>} : vector<8x4xf32>, vector<4x256xf32>, vector<8x256xf32> -> vector<8x256xf32>
    %73 = arith.addf %65, %72 : vector<8x256xf32>
    %c0_48 = arith.constant 0 : index
    %c0_49 = arith.constant 0 : index
    %74 = vector.load %arg3[%c0_48, %c0_49] : memref<8x1xf32, #tpu.memory_space<vmem>>, vector<8x1xf32>
    %75 = vector.broadcast %74 : vector<8x1xf32> to vector<8x256xf32>
    %76 = arith.addf %73, %75 : vector<8x256xf32>
    %cst_50 = arith.constant 0.000000e+00 : f32
    %77 = vector.broadcast %cst_50 : f32 to vector<8x256xf32>
    %78 = arith.maximumf %76, %77 : vector<8x256xf32>
    %c255_i32_51 = arith.constant 255 : i32
    %79 = tpu.dynamic_rotate %78 by %c255_i32_51 dim 1 : vector<8x256xf32>, i32 -> vector<8x256xf32>
    %80 = arith.maximumf %78, %79 : vector<8x256xf32>
    %c240_i32_52 = arith.constant 240 : i32
    %81 = tpu.dynamic_rotate %80 by %c240_i32_52 dim 1 : vector<8x256xf32>, i32 -> vector<8x256xf32>
    %82 = arith.maximumf %80, %81 : vector<8x256xf32>
    %c0_53 = arith.constant 0 : index
    %c0_54 = arith.constant 0 : index
    %83 = vector.load %arg5[%c0_53, %c0_54] : memref<256x128xf32, #tpu.memory_space<vmem>>, vector<256x128xf32>
    %cst_55 = arith.constant dense<0.000000e+00> : vector<8x128xf32>
    %84 = tpu.matmul %82, %83, %cst_55 {dimension_numbers = #tpu.dot_dimension_numbers<[1], [0], [0], [1], [0, 0, 1, 1], [], []>} : vector<8x256xf32>, vector<256x128xf32>, vector<8x128xf32> -> vector<8x128xf32>
    %cst_56 = arith.constant 0.000000e+00 : f32
    %85 = vector.broadcast %cst_56 : f32 to vector<8x128xf32>
    %c9_i32 = arith.constant 9 : i32
    %86 = tpu.dynamic_rotate %84 by %c9_i32 dim 1 : vector<8x128xf32>, i32 -> vector<8x128xf32>
    %c0_57 = arith.constant 0 : index
    %c0_58 = arith.constant 0 : index
    %87 = vector.load %arg8[%c0_57, %c0_58] : memref<9x128xf32, #tpu.memory_space<vmem>>, vector<1x128xf32>
    %88 = vector.broadcast %87 : vector<1x128xf32> to vector<8x128xf32>
    %89 = arith.mulf %86, %88 : vector<8x128xf32>
    %c0_59 = arith.constant 0 : index
    %c0_60 = arith.constant 0 : index
    %c0_61 = arith.constant 0 : index
    %90 = vector.load %arg6[%c0_59, %c0_60, %c0_61] : memref<9x8x8xf32, #tpu.memory_space<vmem>>, vector<1x8x8xf32>
    %91 = vector.shape_cast %90 : vector<1x8x8xf32> to vector<8x8xf32>
    %cst_62 = arith.constant dense<0.000000e+00> : vector<8x128xf32>
    %92 = tpu.matmul %91, %89, %cst_62 {dimension_numbers = #tpu.dot_dimension_numbers<[1], [0], [0], [1], [0, 0, 1, 1], [], []>} : vector<8x8xf32>, vector<8x128xf32>, vector<8x128xf32> -> vector<8x128xf32>
    %93 = arith.addf %85, %92 : vector<8x128xf32>
    %c8_i32 = arith.constant 8 : i32
    %94 = tpu.dynamic_rotate %84 by %c8_i32 dim 1 : vector<8x128xf32>, i32 -> vector<8x128xf32>
    %c1_63 = arith.constant 1 : index
    %c0_64 = arith.constant 0 : index
    %95 = vector.load %arg8[%c1_63, %c0_64] : memref<9x128xf32, #tpu.memory_space<vmem>>, vector<1x128xf32>
    %96 = vector.broadcast %95 : vector<1x128xf32> to vector<8x128xf32>
    %97 = arith.mulf %94, %96 : vector<8x128xf32>
    %c1_65 = arith.constant 1 : index
    %c0_66 = arith.constant 0 : index
    %c0_67 = arith.constant 0 : index
    %98 = vector.load %arg6[%c1_65, %c0_66, %c0_67] : memref<9x8x8xf32, #tpu.memory_space<vmem>>, vector<1x8x8xf32>
    %99 = vector.shape_cast %98 : vector<1x8x8xf32> to vector<8x8xf32>
    %cst_68 = arith.constant dense<0.000000e+00> : vector<8x128xf32>
    %100 = tpu.matmul %99, %97, %cst_68 {dimension_numbers = #tpu.dot_dimension_numbers<[1], [0], [0], [1], [0, 0, 1, 1], [], []>} : vector<8x8xf32>, vector<8x128xf32>, vector<8x128xf32> -> vector<8x128xf32>
    %101 = arith.addf %93, %100 : vector<8x128xf32>
    %c7_i32 = arith.constant 7 : i32
    %102 = tpu.dynamic_rotate %84 by %c7_i32 dim 1 : vector<8x128xf32>, i32 -> vector<8x128xf32>
    %c2_69 = arith.constant 2 : index
    %c0_70 = arith.constant 0 : index
    %103 = vector.load %arg8[%c2_69, %c0_70] : memref<9x128xf32, #tpu.memory_space<vmem>>, vector<1x128xf32>
    %104 = vector.broadcast %103 : vector<1x128xf32> to vector<8x128xf32>
    %105 = arith.mulf %102, %104 : vector<8x128xf32>
    %c2_71 = arith.constant 2 : index
    %c0_72 = arith.constant 0 : index
    %c0_73 = arith.constant 0 : index
    %106 = vector.load %arg6[%c2_71, %c0_72, %c0_73] : memref<9x8x8xf32, #tpu.memory_space<vmem>>, vector<1x8x8xf32>
    %107 = vector.shape_cast %106 : vector<1x8x8xf32> to vector<8x8xf32>
    %cst_74 = arith.constant dense<0.000000e+00> : vector<8x128xf32>
    %108 = tpu.matmul %107, %105, %cst_74 {dimension_numbers = #tpu.dot_dimension_numbers<[1], [0], [0], [1], [0, 0, 1, 1], [], []>} : vector<8x8xf32>, vector<8x128xf32>, vector<8x128xf32> -> vector<8x128xf32>
    %109 = arith.addf %101, %108 : vector<8x128xf32>
    %c1_i32_75 = arith.constant 1 : i32
    %110 = tpu.dynamic_rotate %84 by %c1_i32_75 dim 1 : vector<8x128xf32>, i32 -> vector<8x128xf32>
    %c3_76 = arith.constant 3 : index
    %c0_77 = arith.constant 0 : index
    %111 = vector.load %arg8[%c3_76, %c0_77] : memref<9x128xf32, #tpu.memory_space<vmem>>, vector<1x128xf32>
    %112 = vector.broadcast %111 : vector<1x128xf32> to vector<8x128xf32>
    %113 = arith.mulf %110, %112 : vector<8x128xf32>
    %c3_78 = arith.constant 3 : index
    %c0_79 = arith.constant 0 : index
    %c0_80 = arith.constant 0 : index
    %114 = vector.load %arg6[%c3_78, %c0_79, %c0_80] : memref<9x8x8xf32, #tpu.memory_space<vmem>>, vector<1x8x8xf32>
    %115 = vector.shape_cast %114 : vector<1x8x8xf32> to vector<8x8xf32>
    %cst_81 = arith.constant dense<0.000000e+00> : vector<8x128xf32>
    %116 = tpu.matmul %115, %113, %cst_81 {dimension_numbers = #tpu.dot_dimension_numbers<[1], [0], [0], [1], [0, 0, 1, 1], [], []>} : vector<8x8xf32>, vector<8x128xf32>, vector<8x128xf32> -> vector<8x128xf32>
    %117 = arith.addf %109, %116 : vector<8x128xf32>
    %c4_82 = arith.constant 4 : index
    %c0_83 = arith.constant 0 : index
    %118 = vector.load %arg8[%c4_82, %c0_83] : memref<9x128xf32, #tpu.memory_space<vmem>>, vector<1x128xf32>
    %119 = vector.broadcast %118 : vector<1x128xf32> to vector<8x128xf32>
    %120 = arith.mulf %84, %119 : vector<8x128xf32>
    %c4_84 = arith.constant 4 : index
    %c0_85 = arith.constant 0 : index
    %c0_86 = arith.constant 0 : index
    %121 = vector.load %arg6[%c4_84, %c0_85, %c0_86] : memref<9x8x8xf32, #tpu.memory_space<vmem>>, vector<1x8x8xf32>
    %122 = vector.shape_cast %121 : vector<1x8x8xf32> to vector<8x8xf32>
    %cst_87 = arith.constant dense<0.000000e+00> : vector<8x128xf32>
    %123 = tpu.matmul %122, %120, %cst_87 {dimension_numbers = #tpu.dot_dimension_numbers<[1], [0], [0], [1], [0, 0, 1, 1], [], []>} : vector<8x8xf32>, vector<8x128xf32>, vector<8x128xf32> -> vector<8x128xf32>
    %124 = arith.addf %117, %123 : vector<8x128xf32>
    %c127_i32 = arith.constant 127 : i32
    %125 = tpu.dynamic_rotate %84 by %c127_i32 dim 1 : vector<8x128xf32>, i32 -> vector<8x128xf32>
    %c5_88 = arith.constant 5 : index
    %c0_89 = arith.constant 0 : index
    %126 = vector.load %arg8[%c5_88, %c0_89] : memref<9x128xf32, #tpu.memory_space<vmem>>, vector<1x128xf32>
    %127 = vector.broadcast %126 : vector<1x128xf32> to vector<8x128xf32>
    %128 = arith.mulf %125, %127 : vector<8x128xf32>
    %c5_90 = arith.constant 5 : index
    %c0_91 = arith.constant 0 : index
    %c0_92 = arith.constant 0 : index
    %129 = vector.load %arg6[%c5_90, %c0_91, %c0_92] : memref<9x8x8xf32, #tpu.memory_space<vmem>>, vector<1x8x8xf32>
    %130 = vector.shape_cast %129 : vector<1x8x8xf32> to vector<8x8xf32>
    %cst_93 = arith.constant dense<0.000000e+00> : vector<8x128xf32>
    %131 = tpu.matmul %130, %128, %cst_93 {dimension_numbers = #tpu.dot_dimension_numbers<[1], [0], [0], [1], [0, 0, 1, 1], [], []>} : vector<8x8xf32>, vector<8x128xf32>, vector<8x128xf32> -> vector<8x128xf32>
    %132 = arith.addf %124, %131 : vector<8x128xf32>
    %c121_i32 = arith.constant 121 : i32
    %133 = tpu.dynamic_rotate %84 by %c121_i32 dim 1 : vector<8x128xf32>, i32 -> vector<8x128xf32>
    %c6_94 = arith.constant 6 : index
    %c0_95 = arith.constant 0 : index
    %134 = vector.load %arg8[%c6_94, %c0_95] : memref<9x128xf32, #tpu.memory_space<vmem>>, vector<1x128xf32>
    %135 = vector.broadcast %134 : vector<1x128xf32> to vector<8x128xf32>
    %136 = arith.mulf %133, %135 : vector<8x128xf32>
    %c6_96 = arith.constant 6 : index
    %c0_97 = arith.constant 0 : index
    %c0_98 = arith.constant 0 : index
    %137 = vector.load %arg6[%c6_96, %c0_97, %c0_98] : memref<9x8x8xf32, #tpu.memory_space<vmem>>, vector<1x8x8xf32>
    %138 = vector.shape_cast %137 : vector<1x8x8xf32> to vector<8x8xf32>
    %cst_99 = arith.constant dense<0.000000e+00> : vector<8x128xf32>
    %139 = tpu.matmul %138, %136, %cst_99 {dimension_numbers = #tpu.dot_dimension_numbers<[1], [0], [0], [1], [0, 0, 1, 1], [], []>} : vector<8x8xf32>, vector<8x128xf32>, vector<8x128xf32> -> vector<8x128xf32>
    %140 = arith.addf %132, %139 : vector<8x128xf32>
    %c120_i32 = arith.constant 120 : i32
    %141 = tpu.dynamic_rotate %84 by %c120_i32 dim 1 : vector<8x128xf32>, i32 -> vector<8x128xf32>
    %c7_100 = arith.constant 7 : index
    %c0_101 = arith.constant 0 : index
    %142 = vector.load %arg8[%c7_100, %c0_101] : memref<9x128xf32, #tpu.memory_space<vmem>>, vector<1x128xf32>
    %143 = vector.broadcast %142 : vector<1x128xf32> to vector<8x128xf32>
    %144 = arith.mulf %141, %143 : vector<8x128xf32>
    %c7_102 = arith.constant 7 : index
    %c0_103 = arith.constant 0 : index
    %c0_104 = arith.constant 0 : index
    %145 = vector.load %arg6[%c7_102, %c0_103, %c0_104] : memref<9x8x8xf32, #tpu.memory_space<vmem>>, vector<1x8x8xf32>
    %146 = vector.shape_cast %145 : vector<1x8x8xf32> to vector<8x8xf32>
    %cst_105 = arith.constant dense<0.000000e+00> : vector<8x128xf32>
    %147 = tpu.matmul %146, %144, %cst_105 {dimension_numbers = #tpu.dot_dimension_numbers<[1], [0], [0], [1], [0, 0, 1, 1], [], []>} : vector<8x8xf32>, vector<8x128xf32>, vector<8x128xf32> -> vector<8x128xf32>
    %148 = arith.addf %140, %147 : vector<8x128xf32>
    %c119_i32 = arith.constant 119 : i32
    %149 = tpu.dynamic_rotate %84 by %c119_i32 dim 1 : vector<8x128xf32>, i32 -> vector<8x128xf32>
    %c8_106 = arith.constant 8 : index
    %c0_107 = arith.constant 0 : index
    %150 = vector.load %arg8[%c8_106, %c0_107] : memref<9x128xf32, #tpu.memory_space<vmem>>, vector<1x128xf32>
    %151 = vector.broadcast %150 : vector<1x128xf32> to vector<8x128xf32>
    %152 = arith.mulf %149, %151 : vector<8x128xf32>
    %c8_108 = arith.constant 8 : index
    %c0_109 = arith.constant 0 : index
    %c0_110 = arith.constant 0 : index
    %153 = vector.load %arg6[%c8_108, %c0_109, %c0_110] : memref<9x8x8xf32, #tpu.memory_space<vmem>>, vector<1x8x8xf32>
    %154 = vector.shape_cast %153 : vector<1x8x8xf32> to vector<8x8xf32>
    %cst_111 = arith.constant dense<0.000000e+00> : vector<8x128xf32>
    %155 = tpu.matmul %154, %152, %cst_111 {dimension_numbers = #tpu.dot_dimension_numbers<[1], [0], [0], [1], [0, 0, 1, 1], [], []>} : vector<8x8xf32>, vector<8x128xf32>, vector<8x128xf32> -> vector<8x128xf32>
    %156 = arith.addf %148, %155 : vector<8x128xf32>
    %c0_112 = arith.constant 0 : index
    %c0_113 = arith.constant 0 : index
    %157 = vector.load %arg7[%c0_112, %c0_113] : memref<8x1xf32, #tpu.memory_space<vmem>>, vector<8x1xf32>
    %158 = vector.broadcast %157 : vector<8x1xf32> to vector<8x128xf32>
    %159 = arith.addf %156, %158 : vector<8x128xf32>
    %cst_114 = arith.constant 0.000000e+00 : f32
    %160 = vector.broadcast %cst_114 : f32 to vector<8x128xf32>
    %161 = arith.maximumf %159, %160 : vector<8x128xf32>
    %c127_i32_115 = arith.constant 127 : i32
    %162 = tpu.dynamic_rotate %161 by %c127_i32_115 dim 1 : vector<8x128xf32>, i32 -> vector<8x128xf32>
    %163 = arith.maximumf %161, %162 : vector<8x128xf32>
    %c120_i32_116 = arith.constant 120 : i32
    %164 = tpu.dynamic_rotate %163 by %c120_i32_116 dim 1 : vector<8x128xf32>, i32 -> vector<8x128xf32>
    %165 = arith.maximumf %163, %164 : vector<8x128xf32>
    %c0_117 = arith.constant 0 : index
    %c0_118 = arith.constant 0 : index
    %166 = vector.load %arg9[%c0_117, %c0_118] : memref<128x16xf32, #tpu.memory_space<vmem>>, vector<128x16xf32>
    %cst_119 = arith.constant dense<0.000000e+00> : vector<8x16xf32>
    %167 = tpu.matmul %165, %166, %cst_119 {dimension_numbers = #tpu.dot_dimension_numbers<[1], [0], [0], [1], [0, 0, 1, 1], [], []>} : vector<8x128xf32>, vector<128x16xf32>, vector<8x16xf32> -> vector<8x16xf32>
    %c0_120 = arith.constant 0 : index
    %c0_121 = arith.constant 0 : index
    %168 = vector.load %arg11[%c0_120, %c0_121] : memref<1x32xf32, #tpu.memory_space<vmem>>, vector<1x32xf32>
    %169 = vector.extract_strided_slice %167 {offsets = [0, 0], sizes = [1, 16], strides = [1, 1]} : vector<8x16xf32> to vector<1x16xf32>
    %c0_122 = arith.constant 0 : index
    %c0_123 = arith.constant 0 : index
    %c0_124 = arith.constant 0 : index
    %170 = vector.load %arg10[%c0_122, %c0_123, %c0_124] : memref<8x16x32xf32, #tpu.memory_space<vmem>>, vector<1x16x32xf32>
    %171 = vector.shape_cast %170 : vector<1x16x32xf32> to vector<16x32xf32>
    %cst_125 = arith.constant dense<0.000000e+00> : vector<1x32xf32>
    %172 = tpu.matmul %169, %171, %cst_125 {dimension_numbers = #tpu.dot_dimension_numbers<[1], [0], [0], [1], [0, 0, 1, 1], [], []>} : vector<1x16xf32>, vector<16x32xf32>, vector<1x32xf32> -> vector<1x32xf32>
    %173 = arith.addf %168, %172 : vector<1x32xf32>
    %174 = vector.extract_strided_slice %167 {offsets = [1, 0], sizes = [1, 16], strides = [1, 1]} : vector<8x16xf32> to vector<1x16xf32>
    %c1_126 = arith.constant 1 : index
    %c0_127 = arith.constant 0 : index
    %c0_128 = arith.constant 0 : index
    %175 = vector.load %arg10[%c1_126, %c0_127, %c0_128] : memref<8x16x32xf32, #tpu.memory_space<vmem>>, vector<1x16x32xf32>
    %176 = vector.shape_cast %175 : vector<1x16x32xf32> to vector<16x32xf32>
    %cst_129 = arith.constant dense<0.000000e+00> : vector<1x32xf32>
    %177 = tpu.matmul %174, %176, %cst_129 {dimension_numbers = #tpu.dot_dimension_numbers<[1], [0], [0], [1], [0, 0, 1, 1], [], []>} : vector<1x16xf32>, vector<16x32xf32>, vector<1x32xf32> -> vector<1x32xf32>
    %178 = arith.addf %173, %177 : vector<1x32xf32>
    %179 = vector.extract_strided_slice %167 {offsets = [2, 0], sizes = [1, 16], strides = [1, 1]} : vector<8x16xf32> to vector<1x16xf32>
    %c2_130 = arith.constant 2 : index
    %c0_131 = arith.constant 0 : index
    %c0_132 = arith.constant 0 : index
    %180 = vector.load %arg10[%c2_130, %c0_131, %c0_132] : memref<8x16x32xf32, #tpu.memory_space<vmem>>, vector<1x16x32xf32>
    %181 = vector.shape_cast %180 : vector<1x16x32xf32> to vector<16x32xf32>
    %cst_133 = arith.constant dense<0.000000e+00> : vector<1x32xf32>
    %182 = tpu.matmul %179, %181, %cst_133 {dimension_numbers = #tpu.dot_dimension_numbers<[1], [0], [0], [1], [0, 0, 1, 1], [], []>} : vector<1x16xf32>, vector<16x32xf32>, vector<1x32xf32> -> vector<1x32xf32>
    %183 = arith.addf %178, %182 : vector<1x32xf32>
    %184 = vector.extract_strided_slice %167 {offsets = [3, 0], sizes = [1, 16], strides = [1, 1]} : vector<8x16xf32> to vector<1x16xf32>
    %c3_134 = arith.constant 3 : index
    %c0_135 = arith.constant 0 : index
    %c0_136 = arith.constant 0 : index
    %185 = vector.load %arg10[%c3_134, %c0_135, %c0_136] : memref<8x16x32xf32, #tpu.memory_space<vmem>>, vector<1x16x32xf32>
    %186 = vector.shape_cast %185 : vector<1x16x32xf32> to vector<16x32xf32>
    %cst_137 = arith.constant dense<0.000000e+00> : vector<1x32xf32>
    %187 = tpu.matmul %184, %186, %cst_137 {dimension_numbers = #tpu.dot_dimension_numbers<[1], [0], [0], [1], [0, 0, 1, 1], [], []>} : vector<1x16xf32>, vector<16x32xf32>, vector<1x32xf32> -> vector<1x32xf32>
    %188 = arith.addf %183, %187 : vector<1x32xf32>
    %189 = vector.extract_strided_slice %167 {offsets = [4, 0], sizes = [1, 16], strides = [1, 1]} : vector<8x16xf32> to vector<1x16xf32>
    %c4_138 = arith.constant 4 : index
    %c0_139 = arith.constant 0 : index
    %c0_140 = arith.constant 0 : index
    %190 = vector.load %arg10[%c4_138, %c0_139, %c0_140] : memref<8x16x32xf32, #tpu.memory_space<vmem>>, vector<1x16x32xf32>
    %191 = vector.shape_cast %190 : vector<1x16x32xf32> to vector<16x32xf32>
    %cst_141 = arith.constant dense<0.000000e+00> : vector<1x32xf32>
    %192 = tpu.matmul %189, %191, %cst_141 {dimension_numbers = #tpu.dot_dimension_numbers<[1], [0], [0], [1], [0, 0, 1, 1], [], []>} : vector<1x16xf32>, vector<16x32xf32>, vector<1x32xf32> -> vector<1x32xf32>
    %193 = arith.addf %188, %192 : vector<1x32xf32>
    %194 = vector.extract_strided_slice %167 {offsets = [5, 0], sizes = [1, 16], strides = [1, 1]} : vector<8x16xf32> to vector<1x16xf32>
    %c5_142 = arith.constant 5 : index
    %c0_143 = arith.constant 0 : index
    %c0_144 = arith.constant 0 : index
    %195 = vector.load %arg10[%c5_142, %c0_143, %c0_144] : memref<8x16x32xf32, #tpu.memory_space<vmem>>, vector<1x16x32xf32>
    %196 = vector.shape_cast %195 : vector<1x16x32xf32> to vector<16x32xf32>
    %cst_145 = arith.constant dense<0.000000e+00> : vector<1x32xf32>
    %197 = tpu.matmul %194, %196, %cst_145 {dimension_numbers = #tpu.dot_dimension_numbers<[1], [0], [0], [1], [0, 0, 1, 1], [], []>} : vector<1x16xf32>, vector<16x32xf32>, vector<1x32xf32> -> vector<1x32xf32>
    %198 = arith.addf %193, %197 : vector<1x32xf32>
    %199 = vector.extract_strided_slice %167 {offsets = [6, 0], sizes = [1, 16], strides = [1, 1]} : vector<8x16xf32> to vector<1x16xf32>
    %c6_146 = arith.constant 6 : index
    %c0_147 = arith.constant 0 : index
    %c0_148 = arith.constant 0 : index
    %200 = vector.load %arg10[%c6_146, %c0_147, %c0_148] : memref<8x16x32xf32, #tpu.memory_space<vmem>>, vector<1x16x32xf32>
    %201 = vector.shape_cast %200 : vector<1x16x32xf32> to vector<16x32xf32>
    %cst_149 = arith.constant dense<0.000000e+00> : vector<1x32xf32>
    %202 = tpu.matmul %199, %201, %cst_149 {dimension_numbers = #tpu.dot_dimension_numbers<[1], [0], [0], [1], [0, 0, 1, 1], [], []>} : vector<1x16xf32>, vector<16x32xf32>, vector<1x32xf32> -> vector<1x32xf32>
    %203 = arith.addf %198, %202 : vector<1x32xf32>
    %204 = vector.extract_strided_slice %167 {offsets = [7, 0], sizes = [1, 16], strides = [1, 1]} : vector<8x16xf32> to vector<1x16xf32>
    %c7_150 = arith.constant 7 : index
    %c0_151 = arith.constant 0 : index
    %c0_152 = arith.constant 0 : index
    %205 = vector.load %arg10[%c7_150, %c0_151, %c0_152] : memref<8x16x32xf32, #tpu.memory_space<vmem>>, vector<1x16x32xf32>
    %206 = vector.shape_cast %205 : vector<1x16x32xf32> to vector<16x32xf32>
    %cst_153 = arith.constant dense<0.000000e+00> : vector<1x32xf32>
    %207 = tpu.matmul %204, %206, %cst_153 {dimension_numbers = #tpu.dot_dimension_numbers<[1], [0], [0], [1], [0, 0, 1, 1], [], []>} : vector<1x16xf32>, vector<16x32xf32>, vector<1x32xf32> -> vector<1x32xf32>
    %208 = arith.addf %203, %207 : vector<1x32xf32>
    %cst_154 = arith.constant 0.000000e+00 : f32
    %209 = vector.broadcast %cst_154 : f32 to vector<1x32xf32>
    %210 = arith.maximumf %208, %209 : vector<1x32xf32>
    %c0_155 = arith.constant 0 : index
    %c0_156 = arith.constant 0 : index
    %211 = vector.load %arg12[%c0_155, %c0_156] : memref<32x128xf32, #tpu.memory_space<vmem>>, vector<32x128xf32>
    %cst_157 = arith.constant dense<0.000000e+00> : vector<1x128xf32>
    %212 = tpu.matmul %210, %211, %cst_157 {dimension_numbers = #tpu.dot_dimension_numbers<[1], [0], [0], [1], [0, 0, 1, 1], [], []>} : vector<1x32xf32>, vector<32x128xf32>, vector<1x128xf32> -> vector<1x128xf32>
    %c0_158 = arith.constant 0 : index
    %c0_159 = arith.constant 0 : index
    %213 = vector.load %arg13[%c0_158, %c0_159] : memref<1x128xf32, #tpu.memory_space<vmem>>, vector<1x128xf32>
    %214 = arith.addf %212, %213 : vector<1x128xf32>
    %c0_160 = arith.constant 0 : index
    %c0_161 = arith.constant 0 : index
    %c0_162 = arith.constant 0 : index
    %215 = vector.load %arg14[%c0_160, %c0_161, %c0_162] : memref<1x1x128xf32, #tpu.memory_space<vmem>>, vector<1x1x128xf32>
    %216 = vector.shape_cast %215 : vector<1x1x128xf32> to vector<1x128xf32>
    %217 = vector.shape_cast %214 : vector<1x128xf32> to vector<1x1x128xf32>
    tpu.vector_store %arg14[%c0_160, %c0_161, %c0_162], %217 {strides = array<i32>} : memref<1x1x128xf32, #tpu.memory_space<vmem>>, vector<1x1x128xf32>,
    return
  }
  func.func @transform_0(%arg0: i32) -> (i32, i32, i32) {
    %c0_i32 = arith.constant 0 : i32
    %c0_i32_0 = arith.constant 0 : i32
    %c0_i32_1 = arith.constant 0 : i32
    return %arg0, %c0_i32, %c0_i32_0 : i32, i32, i32
  }
  func.func @transform_1(%arg0: i32) -> (i32, i32, i32) {
    %c0_i32 = arith.constant 0 : i32
    %c0_i32_0 = arith.constant 0 : i32
    %c0_i32_1 = arith.constant 0 : i32
    %c0_i32_2 = arith.constant 0 : i32
    return %c0_i32, %c0_i32_0, %c0_i32_1 : i32, i32, i32
  }
  func.func @transform_2(%arg0: i32) -> (i32, i32) {
    %c0_i32 = arith.constant 0 : i32
    %c0_i32_0 = arith.constant 0 : i32
    %c0_i32_1 = arith.constant 0 : i32
    return %c0_i32, %c0_i32_0 : i32, i32
  }
  func.func @transform_3(%arg0: i32) -> (i32, i32) {
    %c0_i32 = arith.constant 0 : i32
    %c0_i32_0 = arith.constant 0 : i32
    %c0_i32_1 = arith.constant 0 : i32
    return %c0_i32, %c0_i32_0 : i32, i32
  }
  func.func @transform_4(%arg0: i32) -> (i32, i32) {
    %c0_i32 = arith.constant 0 : i32
    %c0_i32_0 = arith.constant 0 : i32
    %c0_i32_1 = arith.constant 0 : i32
    return %c0_i32, %c0_i32_0 : i32, i32
  }
  func.func @transform_5(%arg0: i32) -> (i32, i32, i32) {
    %c0_i32 = arith.constant 0 : i32
    %c0_i32_0 = arith.constant 0 : i32
    %c0_i32_1 = arith.constant 0 : i32
    %c0_i32_2 = arith.constant 0 : i32
    return %c0_i32, %c0_i32_0, %c0_i32_1 : i32, i32, i32
  }
  func.func @transform_6(%arg0: i32) -> (i32, i32) {
    %c0_i32 = arith.constant 0 : i32
    %c0_i32_0 = arith.constant 0 : i32
    %c0_i32_1 = arith.constant 0 : i32
    return %c0_i32, %c0_i32_0 : i32, i32
  }
  func.func @transform_7(%arg0: i32) -> (i32, i32) {
    %c0_i32 = arith.constant 0 : i32
    %c0_i32_0 = arith.constant 0 : i32
    %c0_i32_1 = arith.constant 0 : i32
    return %c0_i32, %c0_i32_0 : i32, i32
  }
  func.func @transform_8(%arg0: i32) -> (i32, i32) {
    %c0_i32 = arith.constant 0 : i32
    %c0_i32_0 = arith.constant 0 : i32
    %c0_i32_1 = arith.constant 0 : i32
    return %c0_i32, %c0_i32_0 : i32, i32
  }
  func.func @transform_9(%arg0: i32) -> (i32, i32, i32) {
    %c0_i32 = arith.constant 0 : i32
    %c0_i32_0 = arith.constant 0 : i32
    %c0_i32_1 = arith.constant 0 : i32
    %c0_i32_2 = arith.constant 0 : i32
    return %c0_i32, %c0_i32_0, %c0_i32_1 : i32, i32, i32
  }
  func.func @transform_10(%arg0: i32) -> (i32, i32) {
    %c0_i32 = arith.constant 0 : i32
    %c0_i32_0 = arith.constant 0 : i32
    %c0_i32_1 = arith.constant 0 : i32
    return %c0_i32, %c0_i32_0 : i32, i32
  }
  func.func @transform_11(%arg0: i32) -> (i32, i32) {
    %c0_i32 = arith.constant 0 : i32
    %c0_i32_0 = arith.constant 0 : i32
    %c0_i32_1 = arith.constant 0 : i32
    return %c0_i32, %c0_i32_0 : i32, i32
  }
  func.func @transform_12(%arg0: i32) -> (i32, i32) {
    %c0_i32 = arith.constant 0 : i32
    %c0_i32_0 = arith.constant 0 : i32
    %c0_i32_1 = arith.constant 0 : i32
    return %c0_i32, %c0_i32_0 : i32, i32
  }
  func.func @transform_13(%arg0: i32) -> (i32, i32, i32) {
    %c0_i32 = arith.constant 0 : i32
    %c0_i32_0 = arith.constant 0 : i32
    %c0_i32_1 = arith.constant 0 : i32
    return %arg0, %c0_i32, %c0_i32_0 : i32, i32, i32
  }
}

</mosaic_0001>

<llo_original>
// kernel: cnn_forward.1
$region0: #{cnn_forward.1}
  #allocation0 [shape = 'u32[]', space=smem, size = 0x4, offset = 0x4, fixed_abs, tag = 'smem constant byte address 0x4 - core index']
  #allocation1 [shape = 'u32[72,128]{1,0:T(1,128)}', space=vmem, size = 0x9000, scoped, tag = 'internal scratch']
  %s0 = inlined_call_operand.vmem [shape: f32[2,4,256], index: 0, kind: input, shape index: {}]
  %s1 = inlined_call_operand.vmem [shape: f32[9,8,4], index: 1, kind: input, shape index: {}]
  %s2 = inlined_call_operand.vmem [shape: f32[8,1], index: 2, kind: input, shape index: {}]
  %s3 = inlined_call_operand.vmem [shape: f32[9,256], index: 3, kind: input, shape index: {}]
  %s4 = inlined_call_operand.vmem [shape: f32[256,128], index: 4, kind: input, shape index: {}]
  %s5 = inlined_call_operand.vmem [shape: f32[9,8,8], index: 5, kind: input, shape index: {}]
  %s6 = inlined_call_operand.vmem [shape: f32[8,1], index: 6, kind: input, shape index: {}]
  %s7 = inlined_call_operand.vmem [shape: f32[9,128], index: 7, kind: input, shape index: {}]
  %s8 = inlined_call_operand.vmem [shape: f32[128,16], index: 8, kind: input, shape index: {}]
  %s9 = inlined_call_operand.vmem [shape: f32[8,16,32], index: 9, kind: input, shape index: {}]
  %s10 = inlined_call_operand.vmem [shape: f32[1,32], index: 10, kind: input, shape index: {}]
  %s11 = inlined_call_operand.vmem [shape: f32[32,128], index: 11, kind: input, shape index: {}]
  %s12 = inlined_call_operand.vmem [shape: f32[1,128], index: 12, kind: input, shape index: {}]
  %s13 = inlined_call_operand.hbm [shape: f32[2,1,128], index: 13, kind: output, shape index: {}]
  %s14 = sld [smem:[#allocation0]]
  $region85: #{cnn_forward.1} parent=0
    _
  %s16 = ssub.s32 1, %s14
  %s17 = scalar_select 0, %s16, %s14
  $region1: #{cnn_forward.1} parent=0
    #allocation2 [shape = 'u8[1024]{0}', space=vmem, size = 0x400, scoped, tag = 'output window, operand 0']
    #allocation3 [shape = 's32[2]{0}', space=sflag, size = 0x8, scoped, tag = 'scoped memory for cnn_forward.1']
    %18 = vsyncpa [#allocation3], 0
    %s19 = scalar_lea.sflag [#allocation3], 1
    %20 = vsyncpa %s19, 0
    loop: start=0, step=1, limit=4
    $region2: #{cnn_forward.1} parent=1 // loop_pre_header
      _
    $region3: #{cnn_forward.1} parent=1 // loop_header
      %s22 = sphi 0, %s26
      %p23 = scmp.ge.s32.totalorder %s22, 4
      %s32 = sphi 0, %s34
      %s35 = sphi 0, %s32
      %s36 = sphi 0, %s35
      %s52 = sphi 0, %s36
      %s56 = sphi 0, %s56
      %s58 = sphi 0, %s56
      %s59 = sphi 0, %s58
      %s73 = sphi 0, %s59
      %s77 = sphi 0, %s77
      %s79 = sphi 0, %s77
      %s80 = sphi 0, %s79
      %s94 = sphi 0, %s80
      %s98 = sphi 0, %s98
      %s100 = sphi 0, %s98
      %s101 = sphi 0, %s100
      %s115 = sphi 0, %s101
      %s119 = sphi 0, %s119
      %s121 = sphi 0, %s119
      %s122 = sphi 0, %s121
      %s136 = sphi 0, %s122
      %s140 = sphi 0, %s140
      %s142 = sphi 0, %s140
      %s143 = sphi 0, %s142
      %s157 = sphi 0, %s143
      %s161 = sphi 0, %s161
      %s163 = sphi 0, %s161
      %s164 = sphi 0, %s163
      %s178 = sphi 0, %s164
      %s182 = sphi 0, %s182
      %s184 = sphi 0, %s182
      %s185 = sphi 0, %s184
      %s199 = sphi 0, %s185
      %s203 = sphi 0, %s203
      %s205 = sphi 0, %s203
      %s206 = sphi 0, %s205
      %s220 = sphi 0, %s206
      %s224 = sphi 0, %s224
      %s226 = sphi 0, %s224
      %s227 = sphi 0, %s226
      %s241 = sphi 0, %s227
      %s245 = sphi 0, %s245
      %s247 = sphi 0, %s245
      %s248 = sphi 0, %s247
      %s262 = sphi 0, %s248
      %s266 = sphi 0, %s266
      %s268 = sphi 0, %s266
      %s269 = sphi 0, %s268
      %s283 = sphi 0, %s269
      %s287 = sphi 0, %s287
      %s289 = sphi 0, %s287
      %s290 = sphi 0, %s289
      %s304 = sphi 0, %s290
      %s310 = sphi 0, %s312
      %s313 = sphi 0, %s310
      %s314 = sphi 0, %s313
      %s330 = sphi 0, %s314
    $region4: #{cnn_forward.1} parent=1 // loop_header_branch
      %25 = sbr.rel (%p23) target = $region8
    $region5: #{cnn_forward.1} parent=1 // loop_body
      %s27 = ssub.s32 %s22, 1
      %s28 = ssub.s32 %s22, 2
      %s29 = sadd.s32 %s22, 1
      %s30 = ssub.s32 %s22, %s29
      %p31 = scmp.eq.s32.totalorder %s30, 0
      %s33 = sadd.s32 %s32, 1
      %s34 = scalar_select %p31, %s32, %s33
      %p37 = pneg %p31
      %p38 = scmp.eq.s32.totalorder %s22, 1
      %p39 = por %p37, %p38
      %p40 = scmp.ne.s32.totalorder %s32, %s35
      %p41 = scmp.eq.s32.totalorder %s22, 0
      %p42 = por %p40, %p41
      %p43 = scmp.ne.s32.totalorder %s32, %s35
      %p44 = scmp.eq.s32.totalorder %s27, 1
      %p45 = por %p43, %p44
      %p46 = scmp.ne.s32.totalorder %s35, %s36
      %p47 = scmp.eq.s32.totalorder %s27, 0
      %p48 = por %p46, %p47
      %p49 = scmp.ne.s32.totalorder %s35, %s36
      %p50 = scmp.eq.s32.totalorder %s28, 1
      %p51 = por %p49, %p50
      %p53 = scmp.ne.s32.totalorder %s36, %s52
      %p54 = scmp.eq.s32.totalorder %s28, 0
      %p55 = por %p53, %p54
      %s57 = sadd.s32 %s56, 1
      %p60 = scmp.eq.s32.totalorder %s22, 1
      %p61 = scmp.ne.s32.totalorder %s56, %s58
      %p62 = scmp.eq.s32.totalorder %s22, 0
      %p63 = por %p61, %p62
      %p64 = scmp.ne.s32.totalorder %s56, %s58
      %p65 = scmp.eq.s32.totalorder %s27, 1
      %p66 = por %p64, %p65
      %p67 = scmp.ne.s32.totalorder %s58, %s59
      %p68 = scmp.eq.s32.totalorder %s27, 0
      %p69 = por %p67, %p68
      %p70 = scmp.ne.s32.totalorder %s58, %s59
      %p71 = scmp.eq.s32.totalorder %s28, 1
      %p72 = por %p70, %p71
      %p74 = scmp.ne.s32.totalorder %s59, %s73
      %p75 = scmp.eq.s32.totalorder %s28, 0
      %p76 = por %p74, %p75
      %s78 = sadd.s32 %s77, 1
      %p81 = scmp.eq.s32.totalorder %s22, 1
      %p82 = scmp.ne.s32.totalorder %s77, %s79
      %p83 = scmp.eq.s32.totalorder %s22, 0
      %p84 = por %p82, %p83
      %p85 = scmp.ne.s32.totalorder %s77, %s79
      %p86 = scmp.eq.s32.totalorder %s27, 1
      %p87 = por %p85, %p86
      %p88 = scmp.ne.s32.totalorder %s79, %s80
      %p89 = scmp.eq.s32.totalorder %s27, 0
      %p90 = por %p88, %p89
      %p91 = scmp.ne.s32.totalorder %s79, %s80
      %p92 = scmp.eq.s32.totalorder %s28, 1
      %p93 = por %p91, %p92
      %p95 = scmp.ne.s32.totalorder %s80, %s94
      %p96 = scmp.eq.s32.totalorder %s28, 0
      %p97 = por %p95, %p96
      %s99 = sadd.s32 %s98, 1
      %p102 = scmp.eq.s32.totalorder %s22, 1
      %p103 = scmp.ne.s32.totalorder %s98, %s100
      %p104 = scmp.eq.s32.totalorder %s22, 0
      %p105 = por %p103, %p104
      %p106 = scmp.ne.s32.totalorder %s98, %s100
      %p107 = scmp.eq.s32.totalorder %s27, 1
      %p108 = por %p106, %p107
      %p109 = scmp.ne.s32.totalorder %s100, %s101
      %p110 = scmp.eq.s32.totalorder %s27, 0
      %p111 = por %p109, %p110
      %p112 = scmp.ne.s32.totalorder %s100, %s101
      %p113 = scmp.eq.s32.totalorder %s28, 1
      %p114 = por %p112, %p113
      %p116 = scmp.ne.s32.totalorder %s101, %s115
      %p117 = scmp.eq.s32.totalorder %s28, 0
      %p118 = por %p116, %p117
      %s120 = sadd.s32 %s119, 1
      %p123 = scmp.eq.s32.totalorder %s22, 1
      %p124 = scmp.ne.s32.totalorder %s119, %s121
      %p125 = scmp.eq.s32.totalorder %s22, 0
      %p126 = por %p124, %p125
      %p127 = scmp.ne.s32.totalorder %s119, %s121
      %p128 = scmp.eq.s32.totalorder %s27, 1
      %p129 = por %p127, %p128
      %p130 = scmp.ne.s32.totalorder %s121, %s122
      %p131 = scmp.eq.s32.totalorder %s27, 0
      %p132 = por %p130, %p131
      %p133 = scmp.ne.s32.totalorder %s121, %s122
      %p134 = scmp.eq.s32.totalorder %s28, 1
      %p135 = por %p133, %p134
      %p137 = scmp.ne.s32.totalorder %s122, %s136
      %p138 = scmp.eq.s32.totalorder %s28, 0
      %p139 = por %p137, %p138
      %s141 = sadd.s32 %s140, 1
      %p144 = scmp.eq.s32.totalorder %s22, 1
      %p145 = scmp.ne.s32.totalorder %s140, %s142
      %p146 = scmp.eq.s32.totalorder %s22, 0
      %p147 = por %p145, %p146
      %p148 = scmp.ne.s32.totalorder %s140, %s142
      %p149 = scmp.eq.s32.totalorder %s27, 1
      %p150 = por %p148, %p149
      %p151 = scmp.ne.s32.totalorder %s142, %s143
      %p152 = scmp.eq.s32.totalorder %s27, 0
      %p153 = por %p151, %p152
      %p154 = scmp.ne.s32.totalorder %s142, %s143
      %p155 = scmp.eq.s32.totalorder %s28, 1
      %p156 = por %p154, %p155
      %p158 = scmp.ne.s32.totalorder %s143, %s157
      %p159 = scmp.eq.s32.totalorder %s28, 0
      %p160 = por %p158, %p159
      %s162 = sadd.s32 %s161, 1
      %p165 = scmp.eq.s32.totalorder %s22, 1
      %p166 = scmp.ne.s32.totalorder %s161, %s163
      %p167 = scmp.eq.s32.totalorder %s22, 0
      %p168 = por %p166, %p167
      %p169 = scmp.ne.s32.totalorder %s161, %s163
      %p170 = scmp.eq.s32.totalorder %s27, 1
      %p171 = por %p169, %p170
      %p172 = scmp.ne.s32.totalorder %s163, %s164
      %p173 = scmp.eq.s32.totalorder %s27, 0
      %p174 = por %p172, %p173
      %p175 = scmp.ne.s32.totalorder %s163, %s164
      %p176 = scmp.eq.s32.totalorder %s28, 1
      %p177 = por %p175, %p176
      %p179 = scmp.ne.s32.totalorder %s164, %s178
      %p180 = scmp.eq.s32.totalorder %s28, 0
      %p181 = por %p179, %p180
      %s183 = sadd.s32 %s182, 1
      %p186 = scmp.eq.s32.totalorder %s22, 1
      %p187 = scmp.ne.s32.totalorder %s182, %s184
      %p188 = scmp.eq.s32.totalorder %s22, 0
      %p189 = por %p187, %p188
      %p190 = scmp.ne.s32.totalorder %s182, %s184
      %p191 = scmp.eq.s32.totalorder %s27, 1
      %p192 = por %p190, %p191
      %p193 = scmp.ne.s32.totalorder %s184, %s185
      %p194 = scmp.eq.s32.totalorder %s27, 0
      %p195 = por %p193, %p194
      %p196 = scmp.ne.s32.totalorder %s184, %s185
      %p197 = scmp.eq.s32.totalorder %s28, 1
      %p198 = por %p196, %p197
      %p200 = scmp.ne.s32.totalorder %s185, %s199
      %p201 = scmp.eq.s32.totalorder %s28, 0
      %p202 = por %p200, %p201
      %s204 = sadd.s32 %s203, 1
      %p207 = scmp.eq.s32.totalorder %s22, 1
      %p208 = scmp.ne.s32.totalorder %s203, %s205
      %p209 = scmp.eq.s32.totalorder %s22, 0
      %p210 = por %p208, %p209
      %p211 = scmp.ne.s32.totalorder %s203, %s205
      %p212 = scmp.eq.s32.totalorder %s27, 1
      %p213 = por %p211, %p212
      %p214 = scmp.ne.s32.totalorder %s205, %s206
      %p215 = scmp.eq.s32.totalorder %s27, 0
      %p216 = por %p214, %p215
      %p217 = scmp.ne.s32.totalorder %s205, %s206
      %p218 = scmp.eq.s32.totalorder %s28, 1
      %p219 = por %p217, %p218
      %p221 = scmp.ne.s32.totalorder %s206, %s220
      %p222 = scmp.eq.s32.totalorder %s28, 0
      %p223 = por %p221, %p222
      %s225 = sadd.s32 %s224, 1
      %p228 = scmp.eq.s32.totalorder %s22, 1
      %p229 = scmp.ne.s32.totalorder %s224, %s226
      %p230 = scmp.eq.s32.totalorder %s22, 0
      %p231 = por %p229, %p230
      %p232 = scmp.ne.s32.totalorder %s224, %s226
      %p233 = scmp.eq.s32.totalorder %s27, 1
      %p234 = por %p232, %p233
      %p235 = scmp.ne.s32.totalorder %s226, %s227
      %p236 = scmp.eq.s32.totalorder %s27, 0
      %p237 = por %p235, %p236
      %p238 = scmp.ne.s32.totalorder %s226, %s227
      %p239 = scmp.eq.s32.totalorder %s28, 1
      %p240 = por %p238, %p239
      %p242 = scmp.ne.s32.totalorder %s227, %s241
      %p243 = scmp.eq.s32.totalorder %s28, 0
      %p244 = por %p242, %p243
      %s246 = sadd.s32 %s245, 1
      %p249 = scmp.eq.s32.totalorder %s22, 1
      %p250 = scmp.ne.s32.totalorder %s245, %s247
      %p251 = scmp.eq.s32.totalorder %s22, 0
      %p252 = por %p250, %p251
      %p253 = scmp.ne.s32.totalorder %s245, %s247
      %p254 = scmp.eq.s32.totalorder %s27, 1
      %p255 = por %p253, %p254
      %p256 = scmp.ne.s32.totalorder %s247, %s248
      %p257 = scmp.eq.s32.totalorder %s27, 0
      %p258 = por %p256, %p257
      %p259 = scmp.ne.s32.totalorder %s247, %s248
      %p260 = scmp.eq.s32.totalorder %s28, 1
      %p261 = por %p259, %p260
      %p263 = scmp.ne.s32.totalorder %s248, %s262
      %p264 = scmp.eq.s32.totalorder %s28, 0
      %p265 = por %p263, %p264
      %s267 = sadd.s32 %s266, 1
      %p270 = scmp.eq.s32.totalorder %s22, 1
      %p271 = scmp.ne.s32.totalorder %s266, %s268
      %p272 = scmp.eq.s32.totalorder %s22, 0
      %p273 = por %p271, %p272
      %p274 = scmp.ne.s32.totalorder %s266, %s268
      %p275 = scmp.eq.s32.totalorder %s27, 1
      %p276 = por %p274, %p275
      %p277 = scmp.ne.s32.totalorder %s268, %s269
      %p278 = scmp.eq.s32.totalorder %s27, 0
      %p279 = por %p277, %p278
      %p280 = scmp.ne.s32.totalorder %s268, %s269
      %p281 = scmp.eq.s32.totalorder %s28, 1
      %p282 = por %p280, %p281
      %p284 = scmp.ne.s32.totalorder %s269, %s283
      %p285 = scmp.eq.s32.totalorder %s28, 0
      %p286 = por %p284, %p285
      %s288 = sadd.s32 %s287, 1
      %p291 = scmp.eq.s32.totalorder %s22, 1
      %p292 = scmp.ne.s32.totalorder %s287, %s289
      %p293 = scmp.eq.s32.totalorder %s22, 0
      %p294 = por %p292, %p293
      %p295 = scmp.ne.s32.totalorder %s287, %s289
      %p296 = scmp.eq.s32.totalorder %s27, 1
      %p297 = por %p295, %p296
      %p298 = scmp.ne.s32.totalorder %s289, %s290
      %p299 = scmp.eq.s32.totalorder %s27, 0
      %p300 = por %p298, %p299
      %p301 = scmp.ne.s32.totalorder %s289, %s290
      %p302 = scmp.eq.s32.totalorder %s28, 1
      %p303 = por %p301, %p302
      %p305 = scmp.ne.s32.totalorder %s290, %s304
      %p306 = scmp.eq.s32.totalorder %s28, 0
      %p307 = por %p305, %p306
      %s308 = ssub.s32 %s22, %s29
      %p309 = scmp.eq.s32.totalorder %s308, 0
      %s311 = sadd.s32 %s310, 1
      %s312 = scalar_select %p309, %s310, %s311
      %p315 = pneg %p309
      %p316 = scmp.eq.s32.totalorder %s22, 1
      %p317 = por %p315, %p316
      %p318 = scmp.ne.s32.totalorder %s310, %s313
      %p319 = scmp.eq.s32.totalorder %s22, 0
      %p320 = por %p318, %p319
      %p321 = scmp.ne.s32.totalorder %s310, %s313
      %p322 = scmp.eq.s32.totalorder %s27, 1
      %p323 = por %p321, %p322
      %p324 = scmp.ne.s32.totalorder %s313, %s314
      %p325 = scmp.eq.s32.totalorder %s27, 0
      %p326 = por %p324, %p325
      %p327 = scmp.ne.s32.totalorder %s313, %s314
      %p328 = scmp.eq.s32.totalorder %s28, 1
      %p329 = por %p327, %p328
      %p331 = scmp.ne.s32.totalorder %s314, %s330
      %p332 = scmp.eq.s32.totalorder %s28, 0
      %p333 = por %p331, %p332
      %p334 = scmp.le.s32.totalorder 1, %s22
      %p335 = scmp.lt.s32.totalorder %s22, 3
      %p336 = pnand %p334, %p335
      %p337 = pneg %p336
      // Predicated region
      $region9: #{cnn_forward.1} parent=5 // pred_check
        _
      $region10: #{cnn_forward.1} parent=5 // pred_check_branch
        %339 = sbr.rel (%p336) target = $region12
      $region11: #{cnn_forward.1} parent=5 // pred_region
        %s340 = ssub.s32 %s22, 1
        // Predicated region
        $region13: #{cnn_forward.1} parent=11 // pred_check
          %p341 = pneg %p69
        $region14: #{cnn_forward.1} parent=11 // pred_check_branch
          %343 = sbr.rel (%p341) target = $region16
        $region15: #{cnn_forward.1} parent=11 // pred_region
          _
        $region16: #{cnn_forward.1} parent=11 // pred_fallthru
          _
        // Predicated region
        $region17: #{cnn_forward.1} parent=11 // pred_check
          %p344 = pneg %p90
        $region18: #{cnn_forward.1} parent=11 // pred_check_branch
          %346 = sbr.rel (%p344) target = $region20
        $region19: #{cnn_forward.1} parent=11 // pred_region
          _
        $region20: #{cnn_forward.1} parent=11 // pred_fallthru
          _
        // Predicated region
        $region21: #{cnn_forward.1} parent=11 // pred_check
          %p347 = pneg %p111
        $region22: #{cnn_forward.1} parent=11 // pred_check_branch
          %349 = sbr.rel (%p347) target = $region24
        $region23: #{cnn_forward.1} parent=11 // pred_region
          _
        $region24: #{cnn_forward.1} parent=11 // pred_fallthru
          _
        // Predicated region
        $region25: #{cnn_forward.1} parent=11 // pred_check
          %p350 = pneg %p132
        $region26: #{cnn_forward.1} parent=11 // pred_check_branch
          %352 = sbr.rel (%p350) target = $region28
        $region27: #{cnn_forward.1} parent=11 // pred_region
          _
        $region28: #{cnn_forward.1} parent=11 // pred_fallthru
          _
        // Predicated region
        $region29: #{cnn_forward.1} parent=11 // pred_check
          %p353 = pneg %p153
        $region30: #{cnn_forward.1} parent=11 // pred_check_branch
          %355 = sbr.rel (%p353) target = $region32
        $region31: #{cnn_forward.1} parent=11 // pred_region
          _
        $region32: #{cnn_forward.1} parent=11 // pred_fallthru
          _
        // Predicated region
        $region33: #{cnn_forward.1} parent=11 // pred_check
          %p356 = pneg %p174
        $region34: #{cnn_forward.1} parent=11 // pred_check_branch
          %358 = sbr.rel (%p356) target = $region36
        $region35: #{cnn_forward.1} parent=11 // pred_region
          _
        $region36: #{cnn_forward.1} parent=11 // pred_fallthru
          _
        // Predicated region
        $region37: #{cnn_forward.1} parent=11 // pred_check
          %p359 = pneg %p195
        $region38: #{cnn_forward.1} parent=11 // pred_check_branch
          %361 = sbr.rel (%p359) target = $region40
        $region39: #{cnn_forward.1} parent=11 // pred_region
          _
        $region40: #{cnn_forward.1} parent=11 // pred_fallthru
          _
        // Predicated region
        $region41: #{cnn_forward.1} parent=11 // pred_check
          %p362 = pneg %p216
        $region42: #{cnn_forward.1} parent=11 // pred_check_branch
          %364 = sbr.rel (%p362) target = $region44
        $region43: #{cnn_forward.1} parent=11 // pred_region
          _
        $region44: #{cnn_forward.1} parent=11 // pred_fallthru
          _
        // Predicated region
        $region45: #{cnn_forward.1} parent=11 // pred_check
          %p365 = pneg %p237
        $region46: #{cnn_forward.1} parent=11 // pred_check_branch
          %367 = sbr.rel (%p365) target = $region48
        $region47: #{cnn_forward.1} parent=11 // pred_region
          _
        $region48: #{cnn_forward.1} parent=11 // pred_fallthru
          _
        // Predicated region
        $region49: #{cnn_forward.1} parent=11 // pred_check
          %p368 = pneg %p258
        $region50: #{cnn_forward.1} parent=11 // pred_check_branch
          %370 = sbr.rel (%p368) target = $region52
        $region51: #{cnn_forward.1} parent=11 // pred_region
          _
        $region52: #{cnn_forward.1} parent=11 // pred_fallthru
          _
        // Predicated region
        $region53: #{cnn_forward.1} parent=11 // pred_check
          %p371 = pneg %p279
        $region54: #{cnn_forward.1} parent=11 // pred_check_branch
          %373 = sbr.rel (%p371) target = $region56
        $region55: #{cnn_forward.1} parent=11 // pred_region
          _
        $region56: #{cnn_forward.1} parent=11 // pred_fallthru
          _
        // Predicated region
        $region57: #{cnn_forward.1} parent=11 // pred_check
          %p374 = pneg %p300
        $region58: #{cnn_forward.1} parent=11 // pred_check_branch
          %376 = sbr.rel (%p374) target = $region60
        $region59: #{cnn_forward.1} parent=11 // pred_region
          _
        $region60: #{cnn_forward.1} parent=11 // pred_fallthru
          _
      $region12: #{cnn_forward.1} parent=5 // pred_fallthru
        _
      %p377 = scmp.lt.s32.totalorder %s22, 2
      // Predicated region
      $region61: #{cnn_forward.1} parent=5 // pred_check
        %p378 = pneg %p377
      $region62: #{cnn_forward.1} parent=5 // pred_check_branch
        %380 = sbr.rel (%p378) target = $region64
      $region63: #{cnn_forward.1} parent=5 // pred_region
        // Predicated region
        $region65: #{cnn_forward.1} parent=63 // pred_check
          %p381 = pneg %p42
        $region66: #{cnn_forward.1} parent=63 // pred_check_branch
          %383 = sbr.rel (%p381) target = $region68
        $region67: #{cnn_forward.1} parent=63 // pred_region
          %p384 = scmp.lt.s32.totalorder %s22, 1
          %s385 = scalar_select %p384, %s22, 1
          %s386 = smul.addr %s385, 2
          %s387 = smul.addr %s386, 4
          %s388 = scalar_lea.vmem %s0, %s387
        $region68: #{cnn_forward.1} parent=63 // pred_fallthru
          _
      $region64: #{cnn_forward.1} parent=5 // pred_fallthru
        _
      %p389 = scmp.le.s32.totalorder 1, %s22
      %p390 = scmp.lt.s32.totalorder %s22, 3
      %p391 = pnand %p389, %p390
      %p392 = pneg %p391
      // Predicated region
      $region69: #{cnn_forward.1} parent=5 // pred_check
        _
      $region70: #{cnn_forward.1} parent=5 // pred_check_branch
        %394 = sbr.rel (%p391) target = $region72
      $region71: #{cnn_forward.1} parent=5 // pred_region
        %s395 = ssub.s32 %s22, 1
        %p396 = scmp.lt.s32.totalorder %s27, 1
        %s397 = scalar_select %p396, %s27, 1
        %s398 = smul.addr %s397, 2
        %s399 = smul.addr %s398, 4
        %s400 = scalar_lea.vmem %s0, %s399
        %p401 = pneg %p48
        %p402 = pneg %p45
        %p403 = pneg %p69
        %p404 = pneg %p66
        %p405 = pneg %p90
        %p406 = pneg %p87
        %p407 = pneg %p111
        %p408 = pneg %p108
        %p409 = pneg %p132
        %p410 = pneg %p129
        %p411 = pneg %p153
        %p412 = pneg %p150
        %p413 = pneg %p174
        %p414 = pneg %p171
        %p415 = pneg %p195
        %p416 = pneg %p192
        %p417 = pneg %p216
        %p418 = pneg %p213
        %p419 = pneg %p237
        %p420 = pneg %p234
        %p421 = pneg %p258
        %p422 = pneg %p255
        %p423 = pneg %p279
        %p424 = pneg %p276
        %p425 = pneg %p300
        %p426 = pneg %p297
        %p427 = pneg %p326
        %p428 = pneg %p323
        %s429 = sand.u32 %s313, 1
        %s430 = scalar_lea.sflag [#allocation3], %s429
        %s431 = sand.u32 %s313, 1
        %s432 = scalar_lea.vmem [#allocation2], %s431
        %p433 = scmp.lt.s32.totalorder %s27, 1
        %s434 = scalar_select %p433, %s27, 1
        %s435 = smul.addr %s434, 2
        %s436 = smul.addr %s435, 4
        %s437 = scalar_lea.vmem %s0, %s436
        %v438 = vld [vmem:[%s437] sm:$0xff]
        %440 = vst [vmem:[#allocation1] ss:$2 sm:$0xff] %v438
        %v441 = vld.sshfl [vmem:[#allocation1] sm:$0xff pattern:$0x75316420]
        %v442 = vld.sshfl [vmem:[#allocation1 + $0x8] sm:$0xff pattern:$0x75316420]
        %445 = vrot.lane.b32.xlu0 %v441, 17
        %v446 = vpop.permute.xlu0 %445
        %447 = vrot.lane.b32.xlu0 %v442, 17
        %v448 = vpop.permute.xlu0 %447
        %v449 = vlaneseq
        %v450 = vand.u32 %v449, 127
        %vm451 = vcmp.lt.s32.totalorder %v450, 17
        %v452 = vsel %vm451, %v446, %v448
        %v453 = vsel %vm451, %v448, %v446
        %v454 = vld [vmem:[%s3] ss:$8 sm:$0x3]
        %v456 = vperm.slane %v454, 0
        %v457 = vperm.slane %v454, 1
        %v460 = vmul.f32 %v453, %v456
        %v461 = vmul.f32 %v452, %v457
        %v462 = vld [vmem:[%s1] sm:$0xff]
        %463 = vst [vmem:[#allocation1] ss:$2 sm:$0xff] %v438
        %v464 = vld.sshfl [vmem:[#allocation1] sm:$0xff pattern:$0x75316420]
        %v465 = vld.sshfl [vmem:[#allocation1 + $0x8] sm:$0xff pattern:$0x75316420]
        %468 = vrot.lane.b32.xlu0 %v464, 16
        %v469 = vpop.permute.xlu0 %468
        %470 = vrot.lane.b32.xlu0 %v465, 16
        %v471 = vpop.permute.xlu0 %470
        %vm472 = vcmp.lt.s32.totalorder %v450, 16
        %v473 = vsel %vm472, %v469, %v471
        %v474 = vsel %vm472, %v471, %v469
        %s475 = scalar_lea.vmem %s3, 1
        %v476 = vld [vmem:[%s475] ss:$8 sm:$0x3]
        %v478 = vperm.slane %v476, 0
        %v479 = vperm.slane %v476, 1
        %v482 = vmul.f32 %v474, %v478
        %v483 = vmul.f32 %v473, %v479
        %s484 = scalar_lea.vmem %s1, 8
        %v485 = vld [vmem:[%s484] sm:$0xff]
        %vm486 = vcmask 31744
        %v488 = vsel %vm486, %v485, 0
        %vm490 = vcmask 1043456
        %v492 = vsel %vm490, %v482, 0
        %v495 = vsel %vm490, %v483, 0
        %497 = vmatpush.msra.mxu0 0.0
        %498 = vmatpush.msra.mxu0 0.0
        %499 = vmatpush.msra.mxu0 0.0
        %500 = vmatpush.msra.mxu0 0.0
        %501 = vmatpush.msra.mxu0 0.0
        %502 = vmatpush.msra.mxu0 0.0
        %503 = vmatpush.msra.mxu0 0.0
        %504 = vmatpush.msra.mxu0 0.0
        %505 = vmatpush.msra.mxu0 0.0
        %506 = vmatpush.msra.mxu0 0.0
        %507 = vmatpush.msra.mxu0 0.0
        %508 = vmatpush.msra.mxu0 0.0
        %509 = vmatpush.msra.mxu0 0.0
        %510 = vmatpush.msra.mxu0 0.0
        %511 = vmatpush.msra.mxu0 0.0
        %512 = vmatpush.msra.mxu0 %v492
        %513 = vmatmul.f32.gmra.mxu0 %v488
        %v514 = vpop.f32.mrf.mxu0
        %v515 = vadd.f32 0.0, %v514
        %516 = vdwg.mxu0
        %517 = vmatpush.msra.mxu0 0.0
        %518 = vmatpush.msra.mxu0 0.0
        %519 = vmatpush.msra.mxu0 0.0
        %520 = vmatpush.msra.mxu0 0.0
        %521 = vmatpush.msra.mxu0 0.0
        %522 = vmatpush.msra.mxu0 0.0
        %523 = vmatpush.msra.mxu0 0.0
        %524 = vmatpush.msra.mxu0 0.0
        %525 = vmatpush.msra.mxu0 0.0
        %526 = vmatpush.msra.mxu0 0.0
        %527 = vmatpush.msra.mxu0 0.0
        %528 = vmatpush.msra.mxu0 0.0
        %529 = vmatpush.msra.mxu0 0.0
        %530 = vmatpush.msra.mxu0 0.0
        %531 = vmatpush.msra.mxu0 0.0
        %532 = vmatpush.msra.mxu0 %v495
        %533 = vmatmul.f32.gmra.mxu0 %v488
        %v534 = vpop.f32.mrf.mxu0
        %v535 = vadd.f32 0.0, %v534
        %536 = vdwg.mxu0
        %v538 = vsel %vm486, %v462, 0
        %v541 = vsel %vm490, %v460, 0
        %v544 = vsel %vm490, %v461, 0
        %546 = vmatpush.msra.mxu0 0.0
        %547 = vmatpush.msra.mxu0 0.0
        %548 = vmatpush.msra.mxu0 0.0
        %549 = vmatpush.msra.mxu0 0.0
        %550 = vmatpush.msra.mxu0 0.0
        %551 = vmatpush.msra.mxu0 0.0
        %552 = vmatpush.msra.mxu0 0.0
        %553 = vmatpush.msra.mxu0 0.0
        %554 = vmatpush.msra.mxu0 0.0
        %555 = vmatpush.msra.mxu0 0.0
        %556 = vmatpush.msra.mxu0 0.0
        %557 = vmatpush.msra.mxu0 0.0
        %558 = vmatpush.msra.mxu0 0.0
        %559 = vmatpush.msra.mxu0 0.0
        %560 = vmatpush.msra.mxu0 0.0
        %561 = vmatpush.msra.mxu0 %v541
        %562 = vmatmul.f32.gmra.mxu0 %v538
        %v563 = vpop.f32.mrf.mxu0
        %v564 = vadd.f32 %v515, %v563
        %565 = vdwg.mxu0
        %566 = vmatpush.msra.mxu0 0.0
        %567 = vmatpush.msra.mxu0 0.0
        %568 = vmatpush.msra.mxu0 0.0
        %569 = vmatpush.msra.mxu0 0.0
        %570 = vmatpush.msra.mxu0 0.0
        %571 = vmatpush.msra.mxu0 0.0
        %572 = vmatpush.msra.mxu0 0.0
        %573 = vmatpush.msra.mxu0 0.0
        %574 = vmatpush.msra.mxu0 0.0
        %575 = vmatpush.msra.mxu0 0.0
        %576 = vmatpush.msra.mxu0 0.0
        %577 = vmatpush.msra.mxu0 0.0
        %578 = vmatpush.msra.mxu0 0.0
        %579 = vmatpush.msra.mxu0 0.0
        %580 = vmatpush.msra.mxu0 0.0
        %581 = vmatpush.msra.mxu0 %v544
        %582 = vmatmul.f32.gmra.mxu0 %v538
        %v583 = vpop.f32.mrf.mxu0
        %v584 = vadd.f32 %v535, %v583
        %585 = vdwg.mxu0
        %586 = vst [vmem:[#allocation1] ss:$2 sm:$0xff] %v438
        %v587 = vld.sshfl [vmem:[#allocation1] sm:$0xff pattern:$0x75316420]
        %v588 = vld.sshfl [vmem:[#allocation1 + $0x8] sm:$0xff pattern:$0x75316420]
        %591 = vrot.lane.b32.xlu0 %v587, 15
        %v592 = vpop.permute.xlu0 %591
        %593 = vrot.lane.b32.xlu0 %v588, 15
        %v594 = vpop.permute.xlu0 %593
        %vm595 = vcmp.lt.s32.totalorder %v450, 15
        %v596 = vsel %vm595, %v592, %v594
        %v597 = vsel %vm595, %v594, %v592
        %s598 = scalar_lea.vmem %s3, 2
        %v599 = vld [vmem:[%s598] ss:$8 sm:$0x3]
        %v601 = vperm.slane %v599, 0
        %v602 = vperm.slane %v599, 1
        %v605 = vmul.f32 %v597, %v601
        %v606 = vmul.f32 %v596, %v602
        %s607 = scalar_lea.vmem %s1, 16
        %v608 = vld [vmem:[%s607] sm:$0xff]
        %v610 = vsel %vm486, %v608, 0
        %v613 = vsel %vm490, %v605, 0
        %v616 = vsel %vm490, %v606, 0
        %618 = vmatpush.msra.mxu0 0.0
        %619 = vmatpush.msra.mxu0 0.0
        %620 = vmatpush.msra.mxu0 0.0
        %621 = vmatpush.msra.mxu0 0.0
        %622 = vmatpush.msra.mxu0 0.0
        %623 = vmatpush.msra.mxu0 0.0
        %624 = vmatpush.msra.mxu0 0.0
        %625 = vmatpush.msra.mxu0 0.0
        %626 = vmatpush.msra.mxu0 0.0
        %627 = vmatpush.msra.mxu0 0.0
        %628 = vmatpush.msra.mxu0 0.0
        %629 = vmatpush.msra.mxu0 0.0
        %630 = vmatpush.msra.mxu0 0.0
        %631 = vmatpush.msra.mxu0 0.0
        %632 = vmatpush.msra.mxu0 0.0
        %633 = vmatpush.msra.mxu0 %v613
        %634 = vmatmul.f32.gmra.mxu0 %v610
        %v635 = vpop.f32.mrf.mxu0
        %v636 = vadd.f32 0.0, %v635
        %637 = vdwg.mxu0
        %638 = vmatpush.msra.mxu0 0.0
        %639 = vmatpush.msra.mxu0 0.0
        %640 = vmatpush.msra.mxu0 0.0
        %641 = vmatpush.msra.mxu0 0.0
        %642 = vmatpush.msra.mxu0 0.0
        %643 = vmatpush.msra.mxu0 0.0
        %644 = vmatpush.msra.mxu0 0.0
        %645 = vmatpush.msra.mxu0 0.0
        %646 = vmatpush.msra.mxu0 0.0
        %647 = vmatpush.msra.mxu0 0.0
        %648 = vmatpush.msra.mxu0 0.0
        %649 = vmatpush.msra.mxu0 0.0
        %650 = vmatpush.msra.mxu0 0.0
        %651 = vmatpush.msra.mxu0 0.0
        %652 = vmatpush.msra.mxu0 0.0
        %653 = vmatpush.msra.mxu0 %v616
        %654 = vmatmul.f32.gmra.mxu0 %v610
        %v655 = vpop.f32.mrf.mxu0
        %v656 = vadd.f32 0.0, %v655
        %657 = vdwg.mxu0
        %v658 = vadd.f32 %v564, %v636
        %v659 = vadd.f32 %v584, %v656
        %660 = vst [vmem:[#allocation1] ss:$2 sm:$0xff] %v438
        %v661 = vld.sshfl [vmem:[#allocation1] sm:$0xff pattern:$0x75316420]
        %v662 = vld.sshfl [vmem:[#allocation1 + $0x8] sm:$0xff pattern:$0x75316420]
        %665 = vrot.lane.b32.xlu0 %v661, 1
        %v666 = vpop.permute.xlu0 %665
        %667 = vrot.lane.b32.xlu0 %v662, 1
        %v668 = vpop.permute.xlu0 %667
        %vm669 = vcmp.lt.s32.totalorder %v450, 1
        %v670 = vsel %vm669, %v666, %v668
        %v671 = vsel %vm669, %v668, %v666
        %s672 = scalar_lea.vmem %s3, 3
        %v673 = vld [vmem:[%s672] ss:$8 sm:$0x3]
        %v675 = vperm.slane %v673, 0
        %v676 = vperm.slane %v673, 1
        %v679 = vmul.f32 %v671, %v675
        %v680 = vmul.f32 %v670, %v676
        %s681 = scalar_lea.vmem %s1, 24
        %v682 = vld [vmem:[%s681] sm:$0xff]
        %v684 = vsel %vm486, %v682, 0
        %v687 = vsel %vm490, %v679, 0
        %v690 = vsel %vm490, %v680, 0
        %692 = vmatpush.msra.mxu0 0.0
        %693 = vmatpush.msra.mxu0 0.0
        %694 = vmatpush.msra.mxu0 0.0
        %695 = vmatpush.msra.mxu0 0.0
        %696 = vmatpush.msra.mxu0 0.0
        %697 = vmatpush.msra.mxu0 0.0
        %698 = vmatpush.msra.mxu0 0.0
        %699 = vmatpush.msra.mxu0 0.0
        %700 = vmatpush.msra.mxu0 0.0
        %701 = vmatpush.msra.mxu0 0.0
        %702 = vmatpush.msra.mxu0 0.0
        %703 = vmatpush.msra.mxu0 0.0
        %704 = vmatpush.msra.mxu0 0.0
        %705 = vmatpush.msra.mxu0 0.0
        %706 = vmatpush.msra.mxu0 0.0
        %707 = vmatpush.msra.mxu0 %v687
        %708 = vmatmul.f32.gmra.mxu0 %v684
        %v709 = vpop.f32.mrf.mxu0
        %v710 = vadd.f32 0.0, %v709
        %711 = vdwg.mxu0
        %712 = vmatpush.msra.mxu0 0.0
        %713 = vmatpush.msra.mxu0 0.0
        %714 = vmatpush.msra.mxu0 0.0
        %715 = vmatpush.msra.mxu0 0.0
        %716 = vmatpush.msra.mxu0 0.0
        %717 = vmatpush.msra.mxu0 0.0
        %718 = vmatpush.msra.mxu0 0.0
        %719 = vmatpush.msra.mxu0 0.0
        %720 = vmatpush.msra.mxu0 0.0
        %721 = vmatpush.msra.mxu0 0.0
        %722 = vmatpush.msra.mxu0 0.0
        %723 = vmatpush.msra.mxu0 0.0
        %724 = vmatpush.msra.mxu0 0.0
        %725 = vmatpush.msra.mxu0 0.0
        %726 = vmatpush.msra.mxu0 0.0
        %727 = vmatpush.msra.mxu0 %v690
        %728 = vmatmul.f32.gmra.mxu0 %v684
        %v729 = vpop.f32.mrf.mxu0
        %v730 = vadd.f32 0.0, %v729
        %731 = vdwg.mxu0
        %v732 = vadd.f32 %v658, %v710
        %v733 = vadd.f32 %v659, %v730
        %s734 = scalar_lea.vmem %s3, 4
        %v735 = vld [vmem:[%s734] ss:$8 sm:$0x3]
        %v737 = vperm.slane %v735, 0
        %v738 = vperm.slane %v735, 1
        %v739 = vrot.slane %v738, 4
        %v740 = vsel %vm490, %v737, %v739
        %v742 = vmul.f32 %v438, %v740
        %s743 = scalar_lea.vmem %s1, 32
        %v744 = vld [vmem:[%s743] sm:$0xff]
        %746 = vst [vmem:[#allocation1] ss:$2 sm:$0xff] %v742
        %v747 = vld.sshfl [vmem:[#allocation1] sm:$0xff pattern:$0x75316420]
        %v748 = vld.sshfl [vmem:[#allocation1 + $0x8] sm:$0xff pattern:$0x75316420]
        %v750 = vsel %vm486, %v744, 0
        %v752 = vsel %vm490, %v747, 0
        %v754 = vsel %vm490, %v748, 0
        %756 = vmatpush.msra.mxu0 0.0
        %757 = vmatpush.msra.mxu0 0.0
        %758 = vmatpush.msra.mxu0 0.0
        %759 = vmatpush.msra.mxu0 0.0
        %760 = vmatpush.msra.mxu0 0.0
        %761 = vmatpush.msra.mxu0 0.0
        %762 = vmatpush.msra.mxu0 0.0
        %763 = vmatpush.msra.mxu0 0.0
        %764 = vmatpush.msra.mxu0 0.0
        %765 = vmatpush.msra.mxu0 0.0
        %766 = vmatpush.msra.mxu0 0.0
        %767 = vmatpush.msra.mxu0 0.0
        %768 = vmatpush.msra.mxu0 0.0
        %769 = vmatpush.msra.mxu0 0.0
        %770 = vmatpush.msra.mxu0 0.0
        %771 = vmatpush.msra.mxu0 %v752
        %772 = vmatmul.f32.gmra.mxu0 %v750
        %v773 = vpop.f32.mrf.mxu0
        %v774 = vadd.f32 0.0, %v773
        %775 = vdwg.mxu0
        %776 = vmatpush.msra.mxu0 0.0
        %777 = vmatpush.msra.mxu0 0.0
        %778 = vmatpush.msra.mxu0 0.0
        %779 = vmatpush.msra.mxu0 0.0
        %780 = vmatpush.msra.mxu0 0.0
        %781 = vmatpush.msra.mxu0 0.0
        %782 = vmatpush.msra.mxu0 0.0
        %783 = vmatpush.msra.mxu0 0.0
        %784 = vmatpush.msra.mxu0 0.0
        %785 = vmatpush.msra.mxu0 0.0
        %786 = vmatpush.msra.mxu0 0.0
        %787 = vmatpush.msra.mxu0 0.0
        %788 = vmatpush.msra.mxu0 0.0
        %789 = vmatpush.msra.mxu0 0.0
        %790 = vmatpush.msra.mxu0 0.0
        %791 = vmatpush.msra.mxu0 %v754
        %792 = vmatmul.f32.gmra.mxu0 %v750
        %v793 = vpop.f32.mrf.mxu0
        %v794 = vadd.f32 0.0, %v793
        %795 = vdwg.mxu0
        %v796 = vadd.f32 %v732, %v774
        %v797 = vadd.f32 %v733, %v794
        %798 = vst [vmem:[#allocation1] ss:$2 sm:$0xff] %v438
        %v799 = vld.sshfl [vmem:[#allocation1] sm:$0xff pattern:$0x75316420]
        %v800 = vld.sshfl [vmem:[#allocation1 + $0x8] sm:$0xff pattern:$0x75316420]
        %803 = vrot.lane.b32.xlu0 %v799, 127
        %v804 = vpop.permute.xlu0 %803
        %805 = vrot.lane.b32.xlu0 %v800, 127
        %v806 = vpop.permute.xlu0 %805
        %vm807 = vcmp.lt.s32.totalorder %v450, 127
        %v808 = vsel %vm807, %v804, %v806
        %v809 = vsel %vm807, %v806, %v804
        %s810 = scalar_lea.vmem %s3, 5
        %v811 = vld [vmem:[%s810] ss:$8 sm:$0x3]
        %v813 = vperm.slane %v811, 0
        %v814 = vperm.slane %v811, 1
        %v817 = vmul.f32 %v808, %v813
        %v818 = vmul.f32 %v809, %v814
        %s819 = scalar_lea.vmem %s1, 40
        %v820 = vld [vmem:[%s819] sm:$0xff]
        %v822 = vsel %vm486, %v820, 0
        %v825 = vsel %vm490, %v817, 0
        %v828 = vsel %vm490, %v818, 0
        %830 = vmatpush.msra.mxu0 0.0
        %831 = vmatpush.msra.mxu0 0.0
        %832 = vmatpush.msra.mxu0 0.0
        %833 = vmatpush.msra.mxu0 0.0
        %834 = vmatpush.msra.mxu0 0.0
        %835 = vmatpush.msra.mxu0 0.0
        %836 = vmatpush.msra.mxu0 0.0
        %837 = vmatpush.msra.mxu0 0.0
        %838 = vmatpush.msra.mxu0 0.0
        %839 = vmatpush.msra.mxu0 0.0
        %840 = vmatpush.msra.mxu0 0.0
        %841 = vmatpush.msra.mxu0 0.0
        %842 = vmatpush.msra.mxu0 0.0
        %843 = vmatpush.msra.mxu0 0.0
        %844 = vmatpush.msra.mxu0 0.0
        %845 = vmatpush.msra.mxu0 %v825
        %846 = vmatmul.f32.gmra.mxu0 %v822
        %v847 = vpop.f32.mrf.mxu0
        %v848 = vadd.f32 0.0, %v847
        %849 = vdwg.mxu0
        %850 = vmatpush.msra.mxu0 0.0
        %851 = vmatpush.msra.mxu0 0.0
        %852 = vmatpush.msra.mxu0 0.0
        %853 = vmatpush.msra.mxu0 0.0
        %854 = vmatpush.msra.mxu0 0.0
        %855 = vmatpush.msra.mxu0 0.0
        %856 = vmatpush.msra.mxu0 0.0
        %857 = vmatpush.msra.mxu0 0.0
        %858 = vmatpush.msra.mxu0 0.0
        %859 = vmatpush.msra.mxu0 0.0
        %860 = vmatpush.msra.mxu0 0.0
        %861 = vmatpush.msra.mxu0 0.0
        %862 = vmatpush.msra.mxu0 0.0
        %863 = vmatpush.msra.mxu0 0.0
        %864 = vmatpush.msra.mxu0 0.0
        %865 = vmatpush.msra.mxu0 %v828
        %866 = vmatmul.f32.gmra.mxu0 %v822
        %v867 = vpop.f32.mrf.mxu0
        %v868 = vadd.f32 0.0, %v867
        %869 = vdwg.mxu0
        %v870 = vadd.f32 %v796, %v848
        %v871 = vadd.f32 %v797, %v868
        %872 = vst [vmem:[#allocation1] ss:$2 sm:$0xff] %v438
        %v873 = vld.sshfl [vmem:[#allocation1] sm:$0xff pattern:$0x75316420]
        %v874 = vld.sshfl [vmem:[#allocation1 + $0x8] sm:$0xff pattern:$0x75316420]
        %877 = vrot.lane.b32.xlu0 %v873, 113
        %v878 = vpop.permute.xlu0 %877
        %879 = vrot.lane.b32.xlu0 %v874, 113
        %v880 = vpop.permute.xlu0 %879
        %vm881 = vcmp.lt.s32.totalorder %v450, 113
        %v882 = vsel %vm881, %v878, %v880
        %v883 = vsel %vm881, %v880, %v878
        %s884 = scalar_lea.vmem %s3, 6
        %v885 = vld [vmem:[%s884] ss:$8 sm:$0x3]
        %v887 = vperm.slane %v885, 0
        %v888 = vperm.slane %v885, 1
        %v891 = vmul.f32 %v882, %v887
        %v892 = vmul.f32 %v883, %v888
        %s893 = scalar_lea.vmem %s1, 48
        %v894 = vld [vmem:[%s893] sm:$0xff]
        %v896 = vsel %vm486, %v894, 0
        %v899 = vsel %vm490, %v891, 0
        %v902 = vsel %vm490, %v892, 0
        %904 = vmatpush.msra.mxu0 0.0
        %905 = vmatpush.msra.mxu0 0.0
        %906 = vmatpush.msra.mxu0 0.0
        %907 = vmatpush.msra.mxu0 0.0
        %908 = vmatpush.msra.mxu0 0.0
        %909 = vmatpush.msra.mxu0 0.0
        %910 = vmatpush.msra.mxu0 0.0
        %911 = vmatpush.msra.mxu0 0.0
        %912 = vmatpush.msra.mxu0 0.0
        %913 = vmatpush.msra.mxu0 0.0
        %914 = vmatpush.msra.mxu0 0.0
        %915 = vmatpush.msra.mxu0 0.0
        %916 = vmatpush.msra.mxu0 0.0
        %917 = vmatpush.msra.mxu0 0.0
        %918 = vmatpush.msra.mxu0 0.0
        %919 = vmatpush.msra.mxu0 %v899
        %920 = vmatmul.f32.gmra.mxu0 %v896
        %v921 = vpop.f32.mrf.mxu0
        %v922 = vadd.f32 0.0, %v921
        %923 = vdwg.mxu0
        %924 = vmatpush.msra.mxu0 0.0
        %925 = vmatpush.msra.mxu0 0.0
        %926 = vmatpush.msra.mxu0 0.0
        %927 = vmatpush.msra.mxu0 0.0
        %928 = vmatpush.msra.mxu0 0.0
        %929 = vmatpush.msra.mxu0 0.0
        %930 = vmatpush.msra.mxu0 0.0
        %931 = vmatpush.msra.mxu0 0.0
        %932 = vmatpush.msra.mxu0 0.0
        %933 = vmatpush.msra.mxu0 0.0
        %934 = vmatpush.msra.mxu0 0.0
        %935 = vmatpush.msra.mxu0 0.0
        %936 = vmatpush.msra.mxu0 0.0
        %937 = vmatpush.msra.mxu0 0.0
        %938 = vmatpush.msra.mxu0 0.0
        %939 = vmatpush.msra.mxu0 %v902
        %940 = vmatmul.f32.gmra.mxu0 %v896
        %v941 = vpop.f32.mrf.mxu0
        %v942 = vadd.f32 0.0, %v941
        %943 = vdwg.mxu0
        %v944 = vadd.f32 %v870, %v922
        %v945 = vadd.f32 %v871, %v942
        %946 = vst [vmem:[#allocation1] ss:$2 sm:$0xff] %v438
        %v947 = vld.sshfl [vmem:[#allocation1] sm:$0xff pattern:$0x75316420]
        %v948 = vld.sshfl [vmem:[#allocation1 + $0x8] sm:$0xff pattern:$0x75316420]
        %951 = vrot.lane.b32.xlu0 %v947, 112
        %v952 = vpop.permute.xlu0 %951
        %953 = vrot.lane.b32.xlu0 %v948, 112
        %v954 = vpop.permute.xlu0 %953
        %vm955 = vcmp.lt.s32.totalorder %v450, 112
        %v956 = vsel %vm955, %v952, %v954
        %v957 = vsel %vm955, %v954, %v952
        %s958 = scalar_lea.vmem %s3, 7
        %v959 = vld [vmem:[%s958] ss:$8 sm:$0x3]
        %v961 = vperm.slane %v959, 0
        %v962 = vperm.slane %v959, 1
        %v965 = vmul.f32 %v956, %v961
        %v966 = vmul.f32 %v957, %v962
        %s967 = scalar_lea.vmem %s1, 56
        %v968 = vld [vmem:[%s967] sm:$0xff]
        %v970 = vsel %vm486, %v968, 0
        %v973 = vsel %vm490, %v965, 0
        %v976 = vsel %vm490, %v966, 0
        %978 = vmatpush.msra.mxu0 0.0
        %979 = vmatpush.msra.mxu0 0.0
        %980 = vmatpush.msra.mxu0 0.0
        %981 = vmatpush.msra.mxu0 0.0
        %982 = vmatpush.msra.mxu0 0.0
        %983 = vmatpush.msra.mxu0 0.0
        %984 = vmatpush.msra.mxu0 0.0
        %985 = vmatpush.msra.mxu0 0.0
        %986 = vmatpush.msra.mxu0 0.0
        %987 = vmatpush.msra.mxu0 0.0
        %988 = vmatpush.msra.mxu0 0.0
        %989 = vmatpush.msra.mxu0 0.0
        %990 = vmatpush.msra.mxu0 0.0
        %991 = vmatpush.msra.mxu0 0.0
        %992 = vmatpush.msra.mxu0 0.0
        %993 = vmatpush.msra.mxu0 %v973
        %994 = vmatmul.f32.gmra.mxu0 %v970
        %v995 = vpop.f32.mrf.mxu0
        %v996 = vadd.f32 0.0, %v995
        %997 = vdwg.mxu0
        %998 = vmatpush.msra.mxu0 0.0
        %999 = vmatpush.msra.mxu0 0.0
        %1000 = vmatpush.msra.mxu0 0.0
        %1001 = vmatpush.msra.mxu0 0.0
        %1002 = vmatpush.msra.mxu0 0.0
        %1003 = vmatpush.msra.mxu0 0.0
        %1004 = vmatpush.msra.mxu0 0.0
        %1005 = vmatpush.msra.mxu0 0.0
        %1006 = vmatpush.msra.mxu0 0.0
        %1007 = vmatpush.msra.mxu0 0.0
        %1008 = vmatpush.msra.mxu0 0.0
        %1009 = vmatpush.msra.mxu0 0.0
        %1010 = vmatpush.msra.mxu0 0.0
        %1011 = vmatpush.msra.mxu0 0.0
        %1012 = vmatpush.msra.mxu0 0.0
        %1013 = vmatpush.msra.mxu0 %v976
        %1014 = vmatmul.f32.gmra.mxu0 %v970
        %v1015 = vpop.f32.mrf.mxu0
        %v1016 = vadd.f32 0.0, %v1015
        %1017 = vdwg.mxu0
        %v1018 = vadd.f32 %v944, %v996
        %v1019 = vadd.f32 %v945, %v1016
        %1020 = vst [vmem:[#allocation1] ss:$2 sm:$0xff] %v438
        %v1021 = vld.sshfl [vmem:[#allocation1] sm:$0xff pattern:$0x75316420]
        %v1022 = vld.sshfl [vmem:[#allocation1 + $0x8] sm:$0xff pattern:$0x75316420]
        %1025 = vrot.lane.b32.xlu0 %v1021, 111
        %v1026 = vpop.permute.xlu0 %1025
        %1027 = vrot.lane.b32.xlu0 %v1022, 111
        %v1028 = vpop.permute.xlu0 %1027
        %vm1029 = vcmp.lt.s32.totalorder %v450, 111
        %v1030 = vsel %vm1029, %v1026, %v1028
        %v1031 = vsel %vm1029, %v1028, %v1026
        %s1032 = scalar_lea.vmem %s3, 16
        %v1033 = vld [vmem:[%s1032] ss:$8 sm:$0x3]
        %v1035 = vperm.slane %v1033, 0
        %v1036 = vperm.slane %v1033, 1
        %v1039 = vmul.f32 %v1030, %v1035
        %v1040 = vmul.f32 %v1031, %v1036
        %s1041 = scalar_lea.vmem %s1, 64
        %v1042 = vld [vmem:[%s1041] sm:$0xff]
        %v1044 = vsel %vm486, %v1042, 0
        %v1047 = vsel %vm490, %v1039, 0
        %v1050 = vsel %vm490, %v1040, 0
        %1052 = vmatpush.msra.mxu0 0.0
        %1053 = vmatpush.msra.mxu0 0.0
        %1054 = vmatpush.msra.mxu0 0.0
        %1055 = vmatpush.msra.mxu0 0.0
        %1056 = vmatpush.msra.mxu0 0.0
        %1057 = vmatpush.msra.mxu0 0.0
        %1058 = vmatpush.msra.mxu0 0.0
        %1059 = vmatpush.msra.mxu0 0.0
        %1060 = vmatpush.msra.mxu0 0.0
        %1061 = vmatpush.msra.mxu0 0.0
        %1062 = vmatpush.msra.mxu0 0.0
        %1063 = vmatpush.msra.mxu0 0.0
        %1064 = vmatpush.msra.mxu0 0.0
        %1065 = vmatpush.msra.mxu0 0.0
        %1066 = vmatpush.msra.mxu0 0.0
        %1067 = vmatpush.msra.mxu0 %v1047
        %1068 = vmatmul.f32.gmra.mxu0 %v1044
        %v1069 = vpop.f32.mrf.mxu0
        %v1070 = vadd.f32 0.0, %v1069
        %1071 = vdwg.mxu0
        %1072 = vmatpush.msra.mxu0 0.0
        %1073 = vmatpush.msra.mxu0 0.0
        %1074 = vmatpush.msra.mxu0 0.0
        %1075 = vmatpush.msra.mxu0 0.0
        %1076 = vmatpush.msra.mxu0 0.0
        %1077 = vmatpush.msra.mxu0 0.0
        %1078 = vmatpush.msra.mxu0 0.0
        %1079 = vmatpush.msra.mxu0 0.0
        %1080 = vmatpush.msra.mxu0 0.0
        %1081 = vmatpush.msra.mxu0 0.0
        %1082 = vmatpush.msra.mxu0 0.0
        %1083 = vmatpush.msra.mxu0 0.0
        %1084 = vmatpush.msra.mxu0 0.0
        %1085 = vmatpush.msra.mxu0 0.0
        %1086 = vmatpush.msra.mxu0 0.0
        %1087 = vmatpush.msra.mxu0 %v1050
        %1088 = vmatmul.f32.gmra.mxu0 %v1044
        %v1089 = vpop.f32.mrf.mxu0
        %v1090 = vadd.f32 0.0, %v1089
        %1091 = vdwg.mxu0
        %v1092 = vadd.f32 %v1018, %v1070
        %v1093 = vadd.f32 %v1019, %v1090
        %v1094 = vld [vmem:[%s2] sm:$0xff]
        %1096 = vset.pattern.permute.xlu0 0
        %1097 = vperm.xlu0 %1096, %v1094
        %v1098 = vpop.permute.xlu0 %1097
        %v1100 = vadd.f32 %v1092, %v1098
        %v1101 = vadd.f32 %v1093, %v1098
        %v1102 = vmax.f32 %v1100, 0.0
        %v1103 = vmax.f32 %v1101, 0.0
        %1104 = vrot.lane.b32.xlu0 %v1102, 127
        %v1105 = vpop.permute.xlu0 %1104
        %1106 = vrot.lane.b32.xlu0 %v1103, 127
        %v1107 = vpop.permute.xlu0 %1106
        %v1108 = vsel %vm807, %v1105, %v1107
        %v1109 = vsel %vm807, %v1107, %v1105
        %v1110 = vmax.f32 %v1102, %v1108
        %v1111 = vmax.f32 %v1103, %v1109
        %1112 = vrot.lane.b32.xlu0 %v1110, 112
        %v1113 = vpop.permute.xlu0 %1112
        %1114 = vrot.lane.b32.xlu0 %v1111, 112
        %v1115 = vpop.permute.xlu0 %1114
        %v1116 = vsel %vm955, %v1113, %v1115
        %v1117 = vsel %vm955, %v1115, %v1113
        %v1118 = vmax.f32 %v1110, %v1116
        %v1119 = vmax.f32 %v1111, %v1117
        %v1120 = vld [vmem:[%s4] sm:$0xff]
        %v1121 = vld [vmem:[%s4 + $0x8] sm:$0xff]
        %v1122 = vld [vmem:[%s4 + $0x10] sm:$0xff]
        %v1123 = vld [vmem:[%s4 + $0x18] sm:$0xff]
        %v1124 = vld [vmem:[%s4 + $0x20] sm:$0xff]
        %v1125 = vld [vmem:[%s4 + $0x28] sm:$0xff]
        %v1126 = vld [vmem:[%s4 + $0x30] sm:$0xff]
        %v1127 = vld [vmem:[%s4 + $0x38] sm:$0xff]
        %v1128 = vld [vmem:[%s4 + $0x40] sm:$0xff]
        %v1129 = vld [vmem:[%s4 + $0x48] sm:$0xff]
        %v1130 = vld [vmem:[%s4 + $0x50] sm:$0xff]
        %v1131 = vld [vmem:[%s4 + $0x58] sm:$0xff]
        %v1132 = vld [vmem:[%s4 + $0x60] sm:$0xff]
        %v1133 = vld [vmem:[%s4 + $0x68] sm:$0xff]
        %v1134 = vld [vmem:[%s4 + $0x70] sm:$0xff]
        %v1135 = vld [vmem:[%s4 + $0x78] sm:$0xff]
        %v1136 = vld [vmem:[%s4 + $0x80] sm:$0xff]
        %v1137 = vld [vmem:[%s4 + $0x88] sm:$0xff]
        %v1138 = vld [vmem:[%s4 + $0x90] sm:$0xff]
        %v1139 = vld [vmem:[%s4 + $0x98] sm:$0xff]
        %v1140 = vld [vmem:[%s4 + $0xa0] sm:$0xff]
        %v1141 = vld [vmem:[%s4 + $0xa8] sm:$0xff]
        %v1142 = vld [vmem:[%s4 + $0xb0] sm:$0xff]
        %v1143 = vld [vmem:[%s4 + $0xb8] sm:$0xff]
        %v1144 = vld [vmem:[%s4 + $0xc0] sm:$0xff]
        %v1145 = vld [vmem:[%s4 + $0xc8] sm:$0xff]
        %v1146 = vld [vmem:[%s4 + $0xd0] sm:$0xff]
        %v1147 = vld [vmem:[%s4 + $0xd8] sm:$0xff]
        %v1148 = vld [vmem:[%s4 + $0xe0] sm:$0xff]
        %v1149 = vld [vmem:[%s4 + $0xe8] sm:$0xff]
        %v1150 = vld [vmem:[%s4 + $0xf0] sm:$0xff]
        %v1151 = vld [vmem:[%s4 + $0xf8] sm:$0xff]
        %1152 = vmatpush.msra.mxu0 %v1135
        %1153 = vmatpush.msra.mxu0 %v1134
        %1154 = vmatpush.msra.mxu0 %v1133
        %1155 = vmatpush.msra.mxu0 %v1132
        %1156 = vmatpush.msra.mxu0 %v1131
        %1157 = vmatpush.msra.mxu0 %v1130
        %1158 = vmatpush.msra.mxu0 %v1129
        %1159 = vmatpush.msra.mxu0 %v1128
        %1160 = vmatpush.msra.mxu0 %v1127
        %1161 = vmatpush.msra.mxu0 %v1126
        %1162 = vmatpush.msra.mxu0 %v1125
        %1163 = vmatpush.msra.mxu0 %v1124
        %1164 = vmatpush.msra.mxu0 %v1123
        %1165 = vmatpush.msra.mxu0 %v1122
        %1166 = vmatpush.msra.mxu0 %v1121
        %1167 = vmatpush.msra.mxu0 %v1120
        %1168 = vmatmul.f32.gmra.mxu0 %v1118
        %v1169 = vpop.f32.mrf.mxu0
        %v1170 = vadd.f32 0.0, %v1169
        %1171 = vdwg.mxu0
        %1172 = vmatpush.msra.mxu0 %v1151
        %1173 = vmatpush.msra.mxu0 %v1150
        %1174 = vmatpush.msra.mxu0 %v1149
        %1175 = vmatpush.msra.mxu0 %v1148
        %1176 = vmatpush.msra.mxu0 %v1147
        %1177 = vmatpush.msra.mxu0 %v1146
        %1178 = vmatpush.msra.mxu0 %v1145
        %1179 = vmatpush.msra.mxu0 %v1144
        %1180 = vmatpush.msra.mxu0 %v1143
        %1181 = vmatpush.msra.mxu0 %v1142
        %1182 = vmatpush.msra.mxu0 %v1141
        %1183 = vmatpush.msra.mxu0 %v1140
        %1184 = vmatpush.msra.mxu0 %v1139
        %1185 = vmatpush.msra.mxu0 %v1138
        %1186 = vmatpush.msra.mxu0 %v1137
        %1187 = vmatpush.msra.mxu0 %v1136
        %1188 = vmatmul.f32.gmra.mxu0 %v1119
        %v1189 = vpop.f32.mrf.mxu0
        %v1190 = vadd.f32 %v1170, %v1189
        %1191 = vdwg.mxu0
        %1192 = vrot.lane.b32.xlu0 %v1190, 9
        %v1193 = vpop.permute.xlu0 %1192
        %v1194 = vld [vmem:[%s7] sm:$0x1]
        %v1195 = vperm.slane %v1194, 0
        %v1196 = vmul.f32 %v1193, %v1195
        %v1197 = vld [vmem:[%s5] sm:$0xff]
        %1198 = vrot.lane.b32.xlu0 %v1190, 8
        %v1199 = vpop.permute.xlu0 %1198
        %v1200 = vld [vmem:[%s7 + $0x1] sm:$0x1]
        %v1201 = vperm.slane %v1200, 0
        %v1202 = vmul.f32 %v1199, %v1201
        %s1203 = scalar_lea.vmem %s5, 8
        %v1204 = vld [vmem:[%s1203] sm:$0xff]
        %vm1205 = vcmask 64512
        %v1207 = vsel %vm1205, %v1204, 0
        %1209 = vmatpush.msra.mxu0 0.0
        %1210 = vmatpush.msra.mxu0 0.0
        %1211 = vmatpush.msra.mxu0 0.0
        %1212 = vmatpush.msra.mxu0 0.0
        %1213 = vmatpush.msra.mxu0 0.0
        %1214 = vmatpush.msra.mxu0 0.0
        %1215 = vmatpush.msra.mxu0 0.0
        %1216 = vmatpush.msra.mxu0 0.0
        %1217 = vmatpush.msra.mxu0 0.0
        %1218 = vmatpush.msra.mxu0 0.0
        %1219 = vmatpush.msra.mxu0 0.0
        %1220 = vmatpush.msra.mxu0 0.0
        %1221 = vmatpush.msra.mxu0 0.0
        %1222 = vmatpush.msra.mxu0 0.0
        %1223 = vmatpush.msra.mxu0 0.0
        %1224 = vmatpush.msra.mxu0 %v1202
        %1225 = vmatmul.f32.gmra.mxu0 %v1207
        %v1226 = vpop.f32.mrf.mxu0
        %v1227 = vadd.f32 0.0, %v1226
        %1228 = vdwg.mxu0
        %v1230 = vsel %vm1205, %v1197, 0
        %1232 = vmatpush.msra.mxu0 0.0
        %1233 = vmatpush.msra.mxu0 0.0
        %1234 = vmatpush.msra.mxu0 0.0
        %1235 = vmatpush.msra.mxu0 0.0
        %1236 = vmatpush.msra.mxu0 0.0
        %1237 = vmatpush.msra.mxu0 0.0
        %1238 = vmatpush.msra.mxu0 0.0
        %1239 = vmatpush.msra.mxu0 0.0
        %1240 = vmatpush.msra.mxu0 0.0
        %1241 = vmatpush.msra.mxu0 0.0
        %1242 = vmatpush.msra.mxu0 0.0
        %1243 = vmatpush.msra.mxu0 0.0
        %1244 = vmatpush.msra.mxu0 0.0
        %1245 = vmatpush.msra.mxu0 0.0
        %1246 = vmatpush.msra.mxu0 0.0
        %1247 = vmatpush.msra.mxu0 %v1196
        %1248 = vmatmul.f32.gmra.mxu0 %v1230
        %v1249 = vpop.f32.mrf.mxu0
        %v1250 = vadd.f32 %v1227, %v1249
        %1251 = vdwg.mxu0
        %1252 = vrot.lane.b32.xlu0 %v1190, 7
        %v1253 = vpop.permute.xlu0 %1252
        %v1254 = vld [vmem:[%s7 + $0x2] sm:$0x1]
        %v1255 = vperm.slane %v1254, 0
        %v1256 = vmul.f32 %v1253, %v1255
        %s1257 = scalar_lea.vmem %s5, 16
        %v1258 = vld [vmem:[%s1257] sm:$0xff]
        %v1260 = vsel %vm1205, %v1258, 0
        %1262 = vmatpush.msra.mxu0 0.0
        %1263 = vmatpush.msra.mxu0 0.0
        %1264 = vmatpush.msra.mxu0 0.0
        %1265 = vmatpush.msra.mxu0 0.0
        %1266 = vmatpush.msra.mxu0 0.0
        %1267 = vmatpush.msra.mxu0 0.0
        %1268 = vmatpush.msra.mxu0 0.0
        %1269 = vmatpush.msra.mxu0 0.0
        %1270 = vmatpush.msra.mxu0 0.0
        %1271 = vmatpush.msra.mxu0 0.0
        %1272 = vmatpush.msra.mxu0 0.0
        %1273 = vmatpush.msra.mxu0 0.0
        %1274 = vmatpush.msra.mxu0 0.0
        %1275 = vmatpush.msra.mxu0 0.0
        %1276 = vmatpush.msra.mxu0 0.0
        %1277 = vmatpush.msra.mxu0 %v1256
        %1278 = vmatmul.f32.gmra.mxu0 %v1260
        %v1279 = vpop.f32.mrf.mxu0
        %v1280 = vadd.f32 0.0, %v1279
        %1281 = vdwg.mxu0
        %v1282 = vadd.f32 %v1250, %v1280
        %1283 = vrot.lane.b32.xlu0 %v1190, 1
        %v1284 = vpop.permute.xlu0 %1283
        %v1285 = vld [vmem:[%s7 + $0x3] sm:$0x1]
        %v1286 = vperm.slane %v1285, 0
        %v1287 = vmul.f32 %v1284, %v1286
        %s1288 = scalar_lea.vmem %s5, 24
        %v1289 = vld [vmem:[%s1288] sm:$0xff]
        %v1291 = vsel %vm1205, %v1289, 0
        %1293 = vmatpush.msra.mxu0 0.0
        %1294 = vmatpush.msra.mxu0 0.0
        %1295 = vmatpush.msra.mxu0 0.0
        %1296 = vmatpush.msra.mxu0 0.0
        %1297 = vmatpush.msra.mxu0 0.0
        %1298 = vmatpush.msra.mxu0 0.0
        %1299 = vmatpush.msra.mxu0 0.0
        %1300 = vmatpush.msra.mxu0 0.0
        %1301 = vmatpush.msra.mxu0 0.0
        %1302 = vmatpush.msra.mxu0 0.0
        %1303 = vmatpush.msra.mxu0 0.0
        %1304 = vmatpush.msra.mxu0 0.0
        %1305 = vmatpush.msra.mxu0 0.0
        %1306 = vmatpush.msra.mxu0 0.0
        %1307 = vmatpush.msra.mxu0 0.0
        %1308 = vmatpush.msra.mxu0 %v1287
        %1309 = vmatmul.f32.gmra.mxu0 %v1291
        %v1310 = vpop.f32.mrf.mxu0
        %v1311 = vadd.f32 0.0, %v1310
        %1312 = vdwg.mxu0
        %v1313 = vadd.f32 %v1282, %v1311
        %v1314 = vld [vmem:[%s7 + $0x4] sm:$0x1]
        %v1315 = vperm.slane %v1314, 0
        %v1316 = vmul.f32 %v1190, %v1315
        %s1317 = scalar_lea.vmem %s5, 32
        %v1318 = vld [vmem:[%s1317] sm:$0xff]
        %v1320 = vsel %vm1205, %v1318, 0
        %1322 = vmatpush.msra.mxu0 0.0
        %1323 = vmatpush.msra.mxu0 0.0
        %1324 = vmatpush.msra.mxu0 0.0
        %1325 = vmatpush.msra.mxu0 0.0
        %1326 = vmatpush.msra.mxu0 0.0
        %1327 = vmatpush.msra.mxu0 0.0
        %1328 = vmatpush.msra.mxu0 0.0
        %1329 = vmatpush.msra.mxu0 0.0
        %1330 = vmatpush.msra.mxu0 0.0
        %1331 = vmatpush.msra.mxu0 0.0
        %1332 = vmatpush.msra.mxu0 0.0
        %1333 = vmatpush.msra.mxu0 0.0
        %1334 = vmatpush.msra.mxu0 0.0
        %1335 = vmatpush.msra.mxu0 0.0
        %1336 = vmatpush.msra.mxu0 0.0
        %1337 = vmatpush.msra.mxu0 %v1316
        %1338 = vmatmul.f32.gmra.mxu0 %v1320
        %v1339 = vpop.f32.mrf.mxu0
        %v1340 = vadd.f32 0.0, %v1339
        %1341 = vdwg.mxu0
        %v1342 = vadd.f32 %v1313, %v1340
        %1343 = vrot.lane.b32.xlu0 %v1190, 127
        %v1344 = vpop.permute.xlu0 %1343
        %v1345 = vld [vmem:[%s7 + $0x5] sm:$0x1]
        %v1346 = vperm.slane %v1345, 0
        %v1347 = vmul.f32 %v1344, %v1346
        %s1348 = scalar_lea.vmem %s5, 40
        %v1349 = vld [vmem:[%s1348] sm:$0xff]
        %v1351 = vsel %vm1205, %v1349, 0
        %1353 = vmatpush.msra.mxu0 0.0
        %1354 = vmatpush.msra.mxu0 0.0
        %1355 = vmatpush.msra.mxu0 0.0
        %1356 = vmatpush.msra.mxu0 0.0
        %1357 = vmatpush.msra.mxu0 0.0
        %1358 = vmatpush.msra.mxu0 0.0
        %1359 = vmatpush.msra.mxu0 0.0
        %1360 = vmatpush.msra.mxu0 0.0
        %1361 = vmatpush.msra.mxu0 0.0
        %1362 = vmatpush.msra.mxu0 0.0
        %1363 = vmatpush.msra.mxu0 0.0
        %1364 = vmatpush.msra.mxu0 0.0
        %1365 = vmatpush.msra.mxu0 0.0
        %1366 = vmatpush.msra.mxu0 0.0
        %1367 = vmatpush.msra.mxu0 0.0
        %1368 = vmatpush.msra.mxu0 %v1347
        %1369 = vmatmul.f32.gmra.mxu0 %v1351
        %v1370 = vpop.f32.mrf.mxu0
        %v1371 = vadd.f32 0.0, %v1370
        %1372 = vdwg.mxu0
        %v1373 = vadd.f32 %v1342, %v1371
        %1374 = vrot.lane.b32.xlu0 %v1190, 121
        %v1375 = vpop.permute.xlu0 %1374
        %v1376 = vld [vmem:[%s7 + $0x6] sm:$0x1]
        %v1377 = vperm.slane %v1376, 0
        %v1378 = vmul.f32 %v1375, %v1377
        %s1379 = scalar_lea.vmem %s5, 48
        %v1380 = vld [vmem:[%s1379] sm:$0xff]
        %v1382 = vsel %vm1205, %v1380, 0
        %1384 = vmatpush.msra.mxu0 0.0
        %1385 = vmatpush.msra.mxu0 0.0
        %1386 = vmatpush.msra.mxu0 0.0
        %1387 = vmatpush.msra.mxu0 0.0
        %1388 = vmatpush.msra.mxu0 0.0
        %1389 = vmatpush.msra.mxu0 0.0
        %1390 = vmatpush.msra.mxu0 0.0
        %1391 = vmatpush.msra.mxu0 0.0
        %1392 = vmatpush.msra.mxu0 0.0
        %1393 = vmatpush.msra.mxu0 0.0
        %1394 = vmatpush.msra.mxu0 0.0
        %1395 = vmatpush.msra.mxu0 0.0
        %1396 = vmatpush.msra.mxu0 0.0
        %1397 = vmatpush.msra.mxu0 0.0
        %1398 = vmatpush.msra.mxu0 0.0
        %1399 = vmatpush.msra.mxu0 %v1378
        %1400 = vmatmul.f32.gmra.mxu0 %v1382
        %v1401 = vpop.f32.mrf.mxu0
        %v1402 = vadd.f32 0.0, %v1401
        %1403 = vdwg.mxu0
        %v1404 = vadd.f32 %v1373, %v1402
        %1405 = vrot.lane.b32.xlu0 %v1190, 120
        %v1406 = vpop.permute.xlu0 %1405
        %v1407 = vld [vmem:[%s7 + $0x7] sm:$0x1]
        %v1408 = vperm.slane %v1407, 0
        %v1409 = vmul.f32 %v1406, %v1408
        %s1410 = scalar_lea.vmem %s5, 56
        %v1411 = vld [vmem:[%s1410] sm:$0xff]
        %v1413 = vsel %vm1205, %v1411, 0
        %1415 = vmatpush.msra.mxu0 0.0
        %1416 = vmatpush.msra.mxu0 0.0
        %1417 = vmatpush.msra.mxu0 0.0
        %1418 = vmatpush.msra.mxu0 0.0
        %1419 = vmatpush.msra.mxu0 0.0
        %1420 = vmatpush.msra.mxu0 0.0
        %1421 = vmatpush.msra.mxu0 0.0
        %1422 = vmatpush.msra.mxu0 0.0
        %1423 = vmatpush.msra.mxu0 0.0
        %1424 = vmatpush.msra.mxu0 0.0
        %1425 = vmatpush.msra.mxu0 0.0
        %1426 = vmatpush.msra.mxu0 0.0
        %1427 = vmatpush.msra.mxu0 0.0
        %1428 = vmatpush.msra.mxu0 0.0
        %1429 = vmatpush.msra.mxu0 0.0
        %1430 = vmatpush.msra.mxu0 %v1409
        %1431 = vmatmul.f32.gmra.mxu0 %v1413
        %v1432 = vpop.f32.mrf.mxu0
        %v1433 = vadd.f32 0.0, %v1432
        %1434 = vdwg.mxu0
        %v1435 = vadd.f32 %v1404, %v1433
        %1436 = vrot.lane.b32.xlu0 %v1190, 119
        %v1437 = vpop.permute.xlu0 %1436
        %v1438 = vld [vmem:[%s7 + $0x8] sm:$0x1]
        %v1439 = vperm.slane %v1438, 0
        %v1440 = vmul.f32 %v1437, %v1439
        %s1441 = scalar_lea.vmem %s5, 64
        %v1442 = vld [vmem:[%s1441] sm:$0xff]
        %v1444 = vsel %vm1205, %v1442, 0
        %1446 = vmatpush.msra.mxu0 0.0
        %1447 = vmatpush.msra.mxu0 0.0
        %1448 = vmatpush.msra.mxu0 0.0
        %1449 = vmatpush.msra.mxu0 0.0
        %1450 = vmatpush.msra.mxu0 0.0
        %1451 = vmatpush.msra.mxu0 0.0
        %1452 = vmatpush.msra.mxu0 0.0
        %1453 = vmatpush.msra.mxu0 0.0
        %1454 = vmatpush.msra.mxu0 0.0
        %1455 = vmatpush.msra.mxu0 0.0
        %1456 = vmatpush.msra.mxu0 0.0
        %1457 = vmatpush.msra.mxu0 0.0
        %1458 = vmatpush.msra.mxu0 0.0
        %1459 = vmatpush.msra.mxu0 0.0
        %1460 = vmatpush.msra.mxu0 0.0
        %1461 = vmatpush.msra.mxu0 %v1440
        %1462 = vmatmul.f32.gmra.mxu0 %v1444
        %v1463 = vpop.f32.mrf.mxu0
        %v1464 = vadd.f32 0.0, %v1463
        %1465 = vdwg.mxu0
        %v1466 = vadd.f32 %v1435, %v1464
        %v1467 = vld [vmem:[%s6] sm:$0xff]
        %1469 = vset.pattern.permute.xlu0 0
        %1470 = vperm.xlu0 %1469, %v1467
        %v1471 = vpop.permute.xlu0 %1470
        %v1473 = vadd.f32 %v1466, %v1471
        %v1474 = vmax.f32 %v1473, 0.0
        %1475 = vrot.lane.b32.xlu0 %v1474, 127
        %v1476 = vpop.permute.xlu0 %1475
        %v1477 = vmax.f32 %v1474, %v1476
        %1478 = vrot.lane.b32.xlu0 %v1477, 120
        %v1479 = vpop.permute.xlu0 %1478
        %v1480 = vmax.f32 %v1477, %v1479
        %v1481 = vld [vmem:[%s8] sm:$0xff]
        %v1482 = vld [vmem:[%s8 + $0x8] sm:$0xff]
        %v1483 = vld [vmem:[%s8 + $0x10] sm:$0xff]
        %v1484 = vld [vmem:[%s8 + $0x18] sm:$0xff]
        %v1485 = vld [vmem:[%s8 + $0x20] sm:$0xff]
        %v1486 = vld [vmem:[%s8 + $0x28] sm:$0xff]
        %v1487 = vld [vmem:[%s8 + $0x30] sm:$0xff]
        %v1488 = vld [vmem:[%s8 + $0x38] sm:$0xff]
        %v1489 = vld [vmem:[%s8 + $0x40] sm:$0xff]
        %v1490 = vld [vmem:[%s8 + $0x48] sm:$0xff]
        %v1491 = vld [vmem:[%s8 + $0x50] sm:$0xff]
        %v1492 = vld [vmem:[%s8 + $0x58] sm:$0xff]
        %v1493 = vld [vmem:[%s8 + $0x60] sm:$0xff]
        %v1494 = vld [vmem:[%s8 + $0x68] sm:$0xff]
        %v1495 = vld [vmem:[%s8 + $0x70] sm:$0xff]
        %v1496 = vld [vmem:[%s8 + $0x78] sm:$0xff]
        %1497 = vmatpush.msra.mxu0 %v1496
        %1498 = vmatpush.msra.mxu0 %v1495
        %1499 = vmatpush.msra.mxu0 %v1494
        %1500 = vmatpush.msra.mxu0 %v1493
        %1501 = vmatpush.msra.mxu0 %v1492
        %1502 = vmatpush.msra.mxu0 %v1491
        %1503 = vmatpush.msra.mxu0 %v1490
        %1504 = vmatpush.msra.mxu0 %v1489
        %1505 = vmatpush.msra.mxu0 %v1488
        %1506 = vmatpush.msra.mxu0 %v1487
        %1507 = vmatpush.msra.mxu0 %v1486
        %1508 = vmatpush.msra.mxu0 %v1485
        %1509 = vmatpush.msra.mxu0 %v1484
        %1510 = vmatpush.msra.mxu0 %v1483
        %1511 = vmatpush.msra.mxu0 %v1482
        %1512 = vmatpush.msra.mxu0 %v1481
        %1513 = vmatmul.f32.gmra.mxu0 %v1480
        %v1514 = vpop.f32.mrf.mxu0
        %v1515 = vadd.f32 0.0, %v1514
        %1516 = vdwg.mxu0
        %v1517 = vld [vmem:[%s10] sm:$0x1]
        %v1518 = vld [vmem:[%s9] sm:$0xff]
        %v1519 = vld [vmem:[%s9 + $0x8] sm:$0xff]
        %vm1520 = vcmask 130048
        %v1522 = vsel %vm1520, %v1515, 0
        %1524 = vmatpush.msra.mxu0 0.0
        %1525 = vmatpush.msra.mxu0 0.0
        %1526 = vmatpush.msra.mxu0 0.0
        %1527 = vmatpush.msra.mxu0 0.0
        %1528 = vmatpush.msra.mxu0 0.0
        %1529 = vmatpush.msra.mxu0 0.0
        %1530 = vmatpush.msra.mxu0 0.0
        %1531 = vmatpush.msra.mxu0 0.0
        %1532 = vmatpush.msra.mxu0 0.0
        %1533 = vmatpush.msra.mxu0 0.0
        %1534 = vmatpush.msra.mxu0 0.0
        %1535 = vmatpush.msra.mxu0 0.0
        %1536 = vmatpush.msra.mxu0 0.0
        %1537 = vmatpush.msra.mxu0 0.0
        %1538 = vmatpush.msra.mxu0 %v1519
        %1539 = vmatpush.msra.mxu0 %v1518
        %1540 = vmatmul.f32.gmra.mxu0 %v1522
        %v1541 = vpop.f32.mrf.mxu0
        %v1542 = vadd.f32 0.0, %v1541
        %1543 = vdwg.mxu0
        %v1544 = vadd.f32 %v1517, %v1542
        %s1545 = scalar_lea.vmem %s9, 16
        %v1546 = vld [vmem:[%s1545] sm:$0xff]
        %v1547 = vld [vmem:[%s1545 + $0x8] sm:$0xff]
        %v1548 = vrot.slane %v1515, 1
        %v1549 = vsel %vm1520, %v1548, 0
        %1551 = vmatpush.msra.mxu0 0.0
        %1552 = vmatpush.msra.mxu0 0.0
        %1553 = vmatpush.msra.mxu0 0.0
        %1554 = vmatpush.msra.mxu0 0.0
        %1555 = vmatpush.msra.mxu0 0.0
        %1556 = vmatpush.msra.mxu0 0.0
        %1557 = vmatpush.msra.mxu0 0.0
        %1558 = vmatpush.msra.mxu0 0.0
        %1559 = vmatpush.msra.mxu0 0.0
        %1560 = vmatpush.msra.mxu0 0.0
        %1561 = vmatpush.msra.mxu0 0.0
        %1562 = vmatpush.msra.mxu0 0.0
        %1563 = vmatpush.msra.mxu0 0.0
        %1564 = vmatpush.msra.mxu0 0.0
        %1565 = vmatpush.msra.mxu0 %v1547
        %1566 = vmatpush.msra.mxu0 %v1546
        %1567 = vmatmul.f32.gmra.mxu0 %v1549
        %v1568 = vpop.f32.mrf.mxu0
        %v1569 = vadd.f32 0.0, %v1568
        %1570 = vdwg.mxu0
        %v1571 = vadd.f32 %v1544, %v1569
        %s1572 = scalar_lea.vmem %s9, 32
        %v1573 = vld [vmem:[%s1572] sm:$0xff]
        %v1574 = vld [vmem:[%s1572 + $0x8] sm:$0xff]
        %v1575 = vrot.slane %v1515, 2
        %v1576 = vsel %vm1520, %v1575, 0
        %1578 = vmatpush.msra.mxu0 0.0
        %1579 = vmatpush.msra.mxu0 0.0
        %1580 = vmatpush.msra.mxu0 0.0
        %1581 = vmatpush.msra.mxu0 0.0
        %1582 = vmatpush.msra.mxu0 0.0
        %1583 = vmatpush.msra.mxu0 0.0
        %1584 = vmatpush.msra.mxu0 0.0
        %1585 = vmatpush.msra.mxu0 0.0
        %1586 = vmatpush.msra.mxu0 0.0
        %1587 = vmatpush.msra.mxu0 0.0
        %1588 = vmatpush.msra.mxu0 0.0
        %1589 = vmatpush.msra.mxu0 0.0
        %1590 = vmatpush.msra.mxu0 0.0
        %1591 = vmatpush.msra.mxu0 0.0
        %1592 = vmatpush.msra.mxu0 %v1574
        %1593 = vmatpush.msra.mxu0 %v1573
        %1594 = vmatmul.f32.gmra.mxu0 %v1576
        %v1595 = vpop.f32.mrf.mxu0
        %v1596 = vadd.f32 0.0, %v1595
        %1597 = vdwg.mxu0
        %v1598 = vadd.f32 %v1571, %v1596
        %s1599 = scalar_lea.vmem %s9, 48
        %v1600 = vld [vmem:[%s1599] sm:$0xff]
        %v1601 = vld [vmem:[%s1599 + $0x8] sm:$0xff]
        %v1602 = vrot.slane %v1515, 3
        %v1603 = vsel %vm1520, %v1602, 0
        %1605 = vmatpush.msra.mxu0 0.0
        %1606 = vmatpush.msra.mxu0 0.0
        %1607 = vmatpush.msra.mxu0 0.0
        %1608 = vmatpush.msra.mxu0 0.0
        %1609 = vmatpush.msra.mxu0 0.0
        %1610 = vmatpush.msra.mxu0 0.0
        %1611 = vmatpush.msra.mxu0 0.0
        %1612 = vmatpush.msra.mxu0 0.0
        %1613 = vmatpush.msra.mxu0 0.0
        %1614 = vmatpush.msra.mxu0 0.0
        %1615 = vmatpush.msra.mxu0 0.0
        %1616 = vmatpush.msra.mxu0 0.0
        %1617 = vmatpush.msra.mxu0 0.0
        %1618 = vmatpush.msra.mxu0 0.0
        %1619 = vmatpush.msra.mxu0 %v1601
        %1620 = vmatpush.msra.mxu0 %v1600
        %1621 = vmatmul.f32.gmra.mxu0 %v1603
        %v1622 = vpop.f32.mrf.mxu0
        %v1623 = vadd.f32 0.0, %v1622
        %1624 = vdwg.mxu0
        %v1625 = vadd.f32 %v1598, %v1623
        %s1626 = scalar_lea.vmem %s9, 64
        %v1627 = vld [vmem:[%s1626] sm:$0xff]
        %v1628 = vld [vmem:[%s1626 + $0x8] sm:$0xff]
        %v1629 = vrot.slane %v1515, 4
        %v1630 = vsel %vm1520, %v1629, 0
        %1632 = vmatpush.msra.mxu0 0.0
        %1633 = vmatpush.msra.mxu0 0.0
        %1634 = vmatpush.msra.mxu0 0.0
        %1635 = vmatpush.msra.mxu0 0.0
        %1636 = vmatpush.msra.mxu0 0.0
        %1637 = vmatpush.msra.mxu0 0.0
        %1638 = vmatpush.msra.mxu0 0.0
        %1639 = vmatpush.msra.mxu0 0.0
        %1640 = vmatpush.msra.mxu0 0.0
        %1641 = vmatpush.msra.mxu0 0.0
        %1642 = vmatpush.msra.mxu0 0.0
        %1643 = vmatpush.msra.mxu0 0.0
        %1644 = vmatpush.msra.mxu0 0.0
        %1645 = vmatpush.msra.mxu0 0.0
        %1646 = vmatpush.msra.mxu0 %v1628
        %1647 = vmatpush.msra.mxu0 %v1627
        %1648 = vmatmul.f32.gmra.mxu0 %v1630
        %v1649 = vpop.f32.mrf.mxu0
        %v1650 = vadd.f32 0.0, %v1649
        %1651 = vdwg.mxu0
        %v1652 = vadd.f32 %v1625, %v1650
        %s1653 = scalar_lea.vmem %s9, 80
        %v1654 = vld [vmem:[%s1653] sm:$0xff]
        %v1655 = vld [vmem:[%s1653 + $0x8] sm:$0xff]
        %v1656 = vrot.slane %v1515, 5
        %v1657 = vsel %vm1520, %v1656, 0
        %1659 = vmatpush.msra.mxu0 0.0
        %1660 = vmatpush.msra.mxu0 0.0
        %1661 = vmatpush.msra.mxu0 0.0
        %1662 = vmatpush.msra.mxu0 0.0
        %1663 = vmatpush.msra.mxu0 0.0
        %1664 = vmatpush.msra.mxu0 0.0
        %1665 = vmatpush.msra.mxu0 0.0
        %1666 = vmatpush.msra.mxu0 0.0
        %1667 = vmatpush.msra.mxu0 0.0
        %1668 = vmatpush.msra.mxu0 0.0
        %1669 = vmatpush.msra.mxu0 0.0
        %1670 = vmatpush.msra.mxu0 0.0
        %1671 = vmatpush.msra.mxu0 0.0
        %1672 = vmatpush.msra.mxu0 0.0
        %1673 = vmatpush.msra.mxu0 %v1655
        %1674 = vmatpush.msra.mxu0 %v1654
        %1675 = vmatmul.f32.gmra.mxu0 %v1657
        %v1676 = vpop.f32.mrf.mxu0
        %v1677 = vadd.f32 0.0, %v1676
        %1678 = vdwg.mxu0
        %v1679 = vadd.f32 %v1652, %v1677
        %s1680 = scalar_lea.vmem %s9, 96
        %v1681 = vld [vmem:[%s1680] sm:$0xff]
        %v1682 = vld [vmem:[%s1680 + $0x8] sm:$0xff]
        %v1683 = vrot.slane %v1515, 6
        %v1684 = vsel %vm1520, %v1683, 0
        %1686 = vmatpush.msra.mxu0 0.0
        %1687 = vmatpush.msra.mxu0 0.0
        %1688 = vmatpush.msra.mxu0 0.0
        %1689 = vmatpush.msra.mxu0 0.0
        %1690 = vmatpush.msra.mxu0 0.0
        %1691 = vmatpush.msra.mxu0 0.0
        %1692 = vmatpush.msra.mxu0 0.0
        %1693 = vmatpush.msra.mxu0 0.0
        %1694 = vmatpush.msra.mxu0 0.0
        %1695 = vmatpush.msra.mxu0 0.0
        %1696 = vmatpush.msra.mxu0 0.0
        %1697 = vmatpush.msra.mxu0 0.0
        %1698 = vmatpush.msra.mxu0 0.0
        %1699 = vmatpush.msra.mxu0 0.0
        %1700 = vmatpush.msra.mxu0 %v1682
        %1701 = vmatpush.msra.mxu0 %v1681
        %1702 = vmatmul.f32.gmra.mxu0 %v1684
        %v1703 = vpop.f32.mrf.mxu0
        %v1704 = vadd.f32 0.0, %v1703
        %1705 = vdwg.mxu0
        %v1706 = vadd.f32 %v1679, %v1704
        %s1707 = scalar_lea.vmem %s9, 112
        %v1708 = vld [vmem:[%s1707] sm:$0xff]
        %v1709 = vld [vmem:[%s1707 + $0x8] sm:$0xff]
        %v1710 = vrot.slane %v1515, 7
        %v1711 = vsel %vm1520, %v1710, 0
        %1713 = vmatpush.msra.mxu0 0.0
        %1714 = vmatpush.msra.mxu0 0.0
        %1715 = vmatpush.msra.mxu0 0.0
        %1716 = vmatpush.msra.mxu0 0.0
        %1717 = vmatpush.msra.mxu0 0.0
        %1718 = vmatpush.msra.mxu0 0.0
        %1719 = vmatpush.msra.mxu0 0.0
        %1720 = vmatpush.msra.mxu0 0.0
        %1721 = vmatpush.msra.mxu0 0.0
        %1722 = vmatpush.msra.mxu0 0.0
        %1723 = vmatpush.msra.mxu0 0.0
        %1724 = vmatpush.msra.mxu0 0.0
        %1725 = vmatpush.msra.mxu0 0.0
        %1726 = vmatpush.msra.mxu0 0.0
        %1727 = vmatpush.msra.mxu0 %v1709
        %1728 = vmatpush.msra.mxu0 %v1708
        %1729 = vmatmul.f32.gmra.mxu0 %v1711
        %v1730 = vpop.f32.mrf.mxu0
        %v1731 = vadd.f32 0.0, %v1730
        %1732 = vdwg.mxu0
        %v1733 = vadd.f32 %v1706, %v1731
        %v1734 = vmax.f32 %v1733, 0.0
        %v1735 = vld [vmem:[%s11] sm:$0xff]
        %v1736 = vld [vmem:[%s11 + $0x8] sm:$0xff]
        %v1737 = vld [vmem:[%s11 + $0x10] sm:$0xff]
        %v1738 = vld [vmem:[%s11 + $0x18] sm:$0xff]
        %v1739 = vld [vmem:[%s12] sm:$0x1]
        %vm1740 = vcmask 261120
        %v1742 = vsel %vm1740, %v1734, 0
        %1744 = vmatpush.msra.mxu0 0.0
        %1745 = vmatpush.msra.mxu0 0.0
        %1746 = vmatpush.msra.mxu0 0.0
        %1747 = vmatpush.msra.mxu0 0.0
        %1748 = vmatpush.msra.mxu0 0.0
        %1749 = vmatpush.msra.mxu0 0.0
        %1750 = vmatpush.msra.mxu0 0.0
        %1751 = vmatpush.msra.mxu0 0.0
        %1752 = vmatpush.msra.mxu0 0.0
        %1753 = vmatpush.msra.mxu0 0.0
        %1754 = vmatpush.msra.mxu0 0.0
        %1755 = vmatpush.msra.mxu0 0.0
        %1756 = vmatpush.msra.mxu0 %v1738
        %1757 = vmatpush.msra.mxu0 %v1737
        %1758 = vmatpush.msra.mxu0 %v1736
        %1759 = vmatpush.msra.mxu0 %v1735
        %1760 = vmatmul.f32.gmra.mxu0 %v1742
        %v1761 = vpop.f32.mrf.mxu0
        %v1762 = vadd.f32 %v1739, %v1761
        %1763 = vdwg.mxu0
        %1764 = vst [vmem:[%s432] sm:$0x1] %v1762
        %s1765 = sand.u32 %s313, 1
        %s1766 = scalar_lea.sflag [#allocation3], %s1765
        %s1767 = sand.u32 %s313, 1
        %s1768 = scalar_lea.vmem [#allocation2], %s1767
        // Predicated region
        $region73: #{cnn_forward.1} parent=71 // pred_check
          %p1769 = pneg %p323
        $region74: #{cnn_forward.1} parent=71 // pred_check_branch
          %1771 = sbr.rel (%p1769) target = $region76
        $region75: #{cnn_forward.1} parent=71 // pred_region
          %1773 = vsyncadd %s1766, 0
          %s1774 = scalar_lea.hbm %s13, %s27
          %s1776 = sshll.u32 %s1768, 4
          %s1777 = int_to_ptr.vmem [resolvable:$true] %s1776
          %s1778 = sshll.u32 %s1774, 4
          %s1779 = int_to_ptr.hbm [resolvable:$true] %s1778
          %1781 = dma.vmem_to_hbm [thread:$0]  %s1777, 16, %s1779, %s1766
        $region76: #{cnn_forward.1} parent=71 // pred_fallthru
          _
      $region72: #{cnn_forward.1} parent=5 // pred_fallthru
        _
      %p1782 = scmp.le.s32.totalorder 2, %s22
      // Predicated region
      $region77: #{cnn_forward.1} parent=5 // pred_check
        %p1783 = pneg %p1782
      $region78: #{cnn_forward.1} parent=5 // pred_check_branch
        %1785 = sbr.rel (%p1783) target = $region80
      $region79: #{cnn_forward.1} parent=5 // pred_region
        %s1786 = ssub.s32 %s22, 2
        // Predicated region
        $region81: #{cnn_forward.1} parent=79 // pred_check
          %p1787 = pneg %p329
        $region82: #{cnn_forward.1} parent=79 // pred_check_branch
          %1789 = sbr.rel (%p1787) target = $region84
        $region83: #{cnn_forward.1} parent=79 // pred_region
          %s1790 = sand.u32 %s314, 1
          %s1791 = scalar_lea.sflag [#allocation3], %s1790
          %s1792 = sand.u32 %s314, 1
          %s1793 = scalar_lea.vmem [#allocation2], %s1792
          %1795 = dma.done %s1791, 16
        $region84: #{cnn_forward.1} parent=79 // pred_fallthru
          _
      $region80: #{cnn_forward.1} parent=5 // pred_fallthru
        _
    $region6: #{cnn_forward.1} parent=1 // loop_footer
      %s26 = sadd.s32 1, %s22
    $region7: #{cnn_forward.1} parent=1 // loop_footer_branch
      %21 = sbr.rel target = $region3
    $region8: #{cnn_forward.1} parent=1 // loop_exit
      _
    %1796 = vsyncpa [#allocation3], 1
    %s1797 = scalar_lea.sflag [#allocation3], 1
    %1798 = vsyncpa %s1797, 1

</llo_original>
